<compile_context>
chip_gen: v5e
topology: v5e:2x2
jax: 0.10.0
libtpu: 0.0.40
codegen_flags: <defaults>
</compile_context>

<pallas_src>
import functools

import jax
import jax.numpy as jnp
from jax.experimental import pallas as pl
from jax.experimental.pallas import tpu as pltpu

EPS = 1e-5  # nn.LayerNorm default


def gated_fusion_kernel(ft_ref, fv_ref, fa_ref, w_ref, p_ref, out_ref, *,
                        use_residual):
    ft = ft_ref[...].astype(jnp.float32)
    fv = fv_ref[...].astype(jnp.float32)
    fa = fa_ref[...].astype(jnp.float32)

    # Shared by the gate product and the residual; computed early so the
    # individual streams die at their matmul (fewer live tiles through LN).
    s = ft + fv + fa

    p = p_ref[...].astype(jnp.float32)       # (3, D): bias, gamma, beta
    bias, gamma, beta = p[0], p[1], p[2]

    # Gate pre-activation: concat([ft, fv, fa], -1) @ W + b, computed as three
    # (tile, D) x (D, D) matmuls against the split weight (no concat copy).
    # DEFAULT precision: single-pass MXU, hidden under the HBM stream.
    z = jnp.dot(ft, w_ref[0].astype(jnp.float32),
                preferred_element_type=jnp.float32)
    z = z + jnp.dot(fv, w_ref[1].astype(jnp.float32),
                    preferred_element_type=jnp.float32)
    z = z + jnp.dot(fa, w_ref[2].astype(jnp.float32),
                    preferred_element_type=jnp.float32)
    z = z + bias

    # LayerNorm over the feature axis (two-pass, f32).
    mean = jnp.mean(z, axis=-1, keepdims=True)
    ctr = z - mean
    var = jnp.mean(ctr * ctr, axis=-1, keepdims=True)
    ln = ctr * jax.lax.rsqrt(var + EPS) * gamma + beta

    g = jax.nn.sigmoid(ln)
    if use_residual:
        g = g + (1.0 / 3.0)                   # fold residual: g*s + s/3 == (g + 1/3)*s
    out_ref[...] = (g * s).astype(out_ref.dtype)


def _default_vmem_limit():
    """Generation-aware scoped-VMEM limit (~half of physical VMEM)."""
    cap = 128 * 1024 * 1024
    try:
        cap = int(pltpu.get_tpu_info().vmem_capacity_bytes)
    except Exception:
        pass
    # v5e/v6e (128 MiB) -> 48 MiB ; v7x (64 MiB) -> 32 MiB
    return min(48 * 1024 * 1024, cap // 2)


def _pick_tile_rows(rows, d_model, vmem_limit_bytes, param_bytes):
    """Row tile sized for the VMEM budget, roofline cap, and >= ~4 grid blocks."""
    # Per row of tile: 4 row streams (F_t, F_v, F_a, out) double-buffered by the
    # pipeline, plus ~6 single-buffered f32 temporaries (casts, z, ctr, ln/g, s,
    # out) live inside the kernel.
    bytes_per_row = (4 * 2 + 6) * d_model * 4
    budget = max(vmem_limit_bytes // 2 - param_bytes, 8 * bytes_per_row)
    t = budget // bytes_per_row
    t = min(int(t), 512)                       # ~roofline by 512 rows; 2048 only adds spill
    t = min(t, max(8, pl.cdiv(rows, 4)))       # aim for >=4 blocks (>=2 for v7x megacore)
    return max(8, (t // 8) * 8)


def _build_call(kernel_fn, rows, d_model, tile_rows, out_dtype, vmem_limit_bytes,
                single_buffer_params):
    grid = pl.cdiv(rows, tile_rows)
    row_spec = pl.BlockSpec((tile_rows, d_model), lambda i: (i, 0))
    if single_buffer_params:
        # Constant index_map -> DMA'd once; a second buffer is dead weight.
        w_spec = pl.BlockSpec((3, d_model, d_model), lambda i: (0, 0, 0),
                              pipeline_mode=pl.Buffered(1))
        p_spec = pl.BlockSpec((3, d_model), lambda i: (0, 0),
                              pipeline_mode=pl.Buffered(1))
    else:
        w_spec = pl.BlockSpec((3, d_model, d_model), lambda i: (0, 0, 0))
        p_spec = pl.BlockSpec((3, d_model), lambda i: (0, 0))

    return pl.pallas_call(
        kernel_fn,
        out_shape=jax.ShapeDtypeStruct((rows, d_model), out_dtype),
        grid_spec=pltpu.PrefetchScalarGridSpec(
            num_scalar_prefetch=0,
            grid=(grid,),
            in_specs=[row_spec, row_spec, row_spec, w_spec, p_spec],
            out_specs=row_spec,
        ),
        compiler_params=pltpu.CompilerParams(
            dimension_semantics=("parallel",),
            vmem_limit_bytes=vmem_limit_bytes,
        ),
    )


def gated_fusion(F_t, F_v, F_a, params, *, use_residual=True,
                 tile_rows=None, vmem_limit_bytes=None):
    """params: w (3, D, D) == split transpose of nn.Linear(3D, D).weight,
               b / gamma / beta each (D,)."""
    assert F_t.shape == F_v.shape == F_a.shape
    B, S, D = F_t.shape
    rows = B * S

    w = params["w"]
    p = jnp.stack([params["b"], params["gamma"], params["beta"]], axis=0)  # (3, D)

    if vmem_limit_bytes is None:
        vmem_limit_bytes = _default_vmem_limit()
    if tile_rows is None:
        # Budget the param slabs conservatively (double-buffered fallback path).
        param_bytes = 2 * (w.size * w.dtype.itemsize + p.size * p.dtype.itemsize)
        tile_rows = _pick_tile_rows(rows, D, vmem_limit_bytes, param_bytes)

    kernel_fn = functools.partial(gated_fusion_kernel, use_residual=use_residual)

    # No padding / slicing: ragged last block is row-local math and the output
    # DMA is clipped to the array bounds by Pallas.
    ft = F_t.reshape(rows, D)
    fv = F_v.reshape(rows, D)
    fa = F_a.reshape(rows, D)

    try:
        call = _build_call(kernel_fn, rows, D, tile_rows, F_t.dtype,
                           vmem_limit_bytes, single_buffer_params=True)
        out = call(ft, fv, fa, w, p)
    except Exception:
        # Fallback if pipeline_mode=pl.Buffered(1) is rejected by this jax build.
        call = _build_call(kernel_fn, rows, D, tile_rows, F_t.dtype,
                           vmem_limit_bytes, single_buffer_params=False)
        out = call(ft, fv, fa, w, p)

    return out.reshape(B, S, D)


def gated_fusion_ref(F_t, F_v, F_a, params, *, use_residual=True):
    """Pure-JAX reference mirroring the PyTorch forward (share_gate=True)."""
    D = F_t.shape[-1]
    w = params["w"].reshape(3 * D, D).astype(jnp.float32)
    x = jnp.concatenate([F_t, F_v, F_a], axis=-1).astype(jnp.float32)
    z = jnp.dot(x, w, precision=jax.lax.Precision.HIGHEST) + params["b"]
    mean = jnp.mean(z, axis=-1, keepdims=True)
    var = jnp.mean((z - mean) ** 2, axis=-1, keepdims=True)
    ln = (z - mean) * jax.lax.rsqrt(var + EPS) * params["gamma"] + params["beta"]
    g = jax.nn.sigmoid(ln)
    out = g * F_t + g * F_v + g * F_a
    if use_residual:
        out = out + (F_t + F_v + F_a) / 3.0
    return out.astype(F_t.dtype)


if __name__ == "__main__":
    # d_model = 128 keeps the feature axis lane-dense (one full vreg lane row).
    B, S, D = 2, 8, 128
    key = jax.random.PRNGKey(0)
    kt, kv_, ka, kw, kb, kg, kbe = jax.random.split(key, 7)

    F_t = jax.random.normal(kt, (B, S, D), dtype=jnp.float32)
    F_v = jax.random.normal(kv_, (B, S, D), dtype=jnp.float32)
    F_a = jax.random.normal(ka, (B, S, D), dtype=jnp.float32)

    params = {
        # (3, D, D): transpose of nn.Linear(3*D, D).weight, split per input stream
        "w": 0.05 * jax.random.normal(kw, (3, D, D), dtype=jnp.float32),
        "b": 0.01 * jax.random.normal(kb, (D,), dtype=jnp.float32),
        "gamma": 1.0 + 0.01 * jax.random.normal(kg, (D,), dtype=jnp.float32),
        "beta": 0.01 * jax.random.normal(kbe, (D,), dtype=jnp.float32),
    }

    out = gated_fusion(F_t, F_v, F_a, params)
    out = jax.block_until_ready(out)

    ref = gated_fusion_ref(F_t, F_v, F_a, params)
    assert out.shape == (B, S, D)
    err = float(jnp.max(jnp.abs(out - ref)))
    # Tolerance relaxed vs the HIGHEST-precision reference: the kernel uses
    # DEFAULT (single-pass bf16 MXU) dots; LN + sigmoid compress the delta.
    assert jnp.allclose(out, ref, atol=2e-2, rtol=2e-2), \
        f"mismatch vs reference: max abs err = {err}"

    print("KERNEL_OK")
</pallas_src>

<mosaic_0001>
module attributes {stable_mosaic.version = 11 : i64} {
  func.func @gated_fusion_kernel(%arg0: i32, %arg1: memref<8x128xf32, #tpu.memory_space<vmem>>, %arg2: memref<8x128xf32, #tpu.memory_space<vmem>>, %arg3: memref<8x128xf32, #tpu.memory_space<vmem>>, %arg4: memref<3x128x128xf32, #tpu.memory_space<vmem>>, %arg5: memref<3x128xf32, #tpu.memory_space<vmem>>, %arg6: memref<8x128xf32, #tpu.memory_space<vmem>>) attributes {dimension_semantics = [#tpu.dimension_semantics<parallel>], iteration_bounds = array<i64: 2>, scalar_prefetch = 0 : i64, scratch_operands = 0 : i64, tpu.core_type = #tpu.core_type<tc>, window_params = [{transform_indices = @transform_0, window_bounds = array<i64: 8, 128>}, {transform_indices = @transform_1, window_bounds = array<i64: 8, 128>}, {transform_indices = @transform_2, window_bounds = array<i64: 8, 128>}, {pipeline_mode = #tpu.pipeline_mode<synchronous>, transform_indices = @transform_3, window_bounds = array<i64: 3, 128, 128>}, {pipeline_mode = #tpu.pipeline_mode<synchronous>, transform_indices = @transform_4, window_bounds = array<i64: 3, 128>}, {transform_indices = @transform_5, window_bounds = array<i64: 8, 128>}]} {
    %c0 = arith.constant 0 : index
    %c0_0 = arith.constant 0 : index
    %0 = vector.load %arg1[%c0, %c0_0] : memref<8x128xf32, #tpu.memory_space<vmem>>, vector<8x128xf32>
    %c0_1 = arith.constant 0 : index
    %c0_2 = arith.constant 0 : index
    %1 = vector.load %arg2[%c0_1, %c0_2] : memref<8x128xf32, #tpu.memory_space<vmem>>, vector<8x128xf32>
    %c0_3 = arith.constant 0 : index
    %c0_4 = arith.constant 0 : index
    %2 = vector.load %arg3[%c0_3, %c0_4] : memref<8x128xf32, #tpu.memory_space<vmem>>, vector<8x128xf32>
    %3 = arith.addf %0, %1 : vector<8x128xf32>
    %4 = arith.addf %3, %2 : vector<8x128xf32>
    %c0_5 = arith.constant 0 : index
    %c0_6 = arith.constant 0 : index
    %5 = vector.load %arg5[%c0_5, %c0_6] : memref<3x128xf32, #tpu.memory_space<vmem>>, vector<3x128xf32>
    %6 = vector.extract_strided_slice %5 {offsets = [0, 0], sizes = [1, 128], strides = [1, 1]} : vector<3x128xf32> to vector<1x128xf32>
    %7 = vector.shape_cast %6 : vector<1x128xf32> to vector<128xf32>
    %8 = vector.extract_strided_slice %5 {offsets = [1, 0], sizes = [1, 128], strides = [1, 1]} : vector<3x128xf32> to vector<1x128xf32>
    %9 = vector.shape_cast %8 : vector<1x128xf32> to vector<128xf32>
    %10 = vector.extract_strided_slice %5 {offsets = [2, 0], sizes = [1, 128], strides = [1, 1]} : vector<3x128xf32> to vector<1x128xf32>
    %11 = vector.shape_cast %10 : vector<1x128xf32> to vector<128xf32>
    %c0_7 = arith.constant 0 : index
    %c0_8 = arith.constant 0 : index
    %c0_9 = arith.constant 0 : index
    %12 = vector.load %arg4[%c0_7, %c0_8, %c0_9] : memref<3x128x128xf32, #tpu.memory_space<vmem>>, vector<1x128x128xf32>
    %13 = vector.shape_cast %12 : vector<1x128x128xf32> to vector<128x128xf32>
    %cst = arith.constant dense<0.000000e+00> : vector<8x128xf32>
    %14 = tpu.matmul %0, %13, %cst {dimension_numbers = #tpu.dot_dimension_numbers<[1], [0], [0], [1], [0, 0, 1, 1], [], []>} : vector<8x128xf32>, vector<128x128xf32>, vector<8x128xf32> -> vector<8x128xf32>
    %c1 = arith.constant 1 : index
    %c0_10 = arith.constant 0 : index
    %c0_11 = arith.constant 0 : index
    %15 = vector.load %arg4[%c1, %c0_10, %c0_11] : memref<3x128x128xf32, #tpu.memory_space<vmem>>, vector<1x128x128xf32>
    %16 = vector.shape_cast %15 : vector<1x128x128xf32> to vector<128x128xf32>
    %cst_12 = arith.constant dense<0.000000e+00> : vector<8x128xf32>
    %17 = tpu.matmul %1, %16, %cst_12 {dimension_numbers = #tpu.dot_dimension_numbers<[1], [0], [0], [1], [0, 0, 1, 1], [], []>} : vector<8x128xf32>, vector<128x128xf32>, vector<8x128xf32> -> vector<8x128xf32>
    %18 = arith.addf %14, %17 : vector<8x128xf32>
    %c2 = arith.constant 2 : index
    %c0_13 = arith.constant 0 : index
    %c0_14 = arith.constant 0 : index
    %19 = vector.load %arg4[%c2, %c0_13, %c0_14] : memref<3x128x128xf32, #tpu.memory_space<vmem>>, vector<1x128x128xf32>
    %20 = vector.shape_cast %19 : vector<1x128x128xf32> to vector<128x128xf32>
    %cst_15 = arith.constant dense<0.000000e+00> : vector<8x128xf32>
    %21 = tpu.matmul %2, %20, %cst_15 {dimension_numbers = #tpu.dot_dimension_numbers<[1], [0], [0], [1], [0, 0, 1, 1], [], []>} : vector<8x128xf32>, vector<128x128xf32>, vector<8x128xf32> -> vector<8x128xf32>
    %22 = arith.addf %18, %21 : vector<8x128xf32>
    %23 = vector.shape_cast %7 : vector<128xf32> to vector<1x128xf32>
    %24 = vector.broadcast %23 : vector<1x128xf32> to vector<8x128xf32>
    %25 = arith.addf %22, %24 : vector<8x128xf32>
    %cst_16 = arith.constant dense<0.000000e+00> : vector<8xf32>
    %26 = vector.multi_reduction <add>, %25, %cst_16 [1] : vector<8x128xf32> to vector<8xf32>
    %27 = vector.shape_cast %26 : vector<8xf32> to vector<8x1xf32>
    %cst_17 = arith.constant 1.280000e+02 : f32
    %28 = vector.broadcast %cst_17 : f32 to vector<8x1xf32>
    %29 = arith.divf %27, %28 : vector<8x1xf32>
    %30 = vector.broadcast %29 : vector<8x1xf32> to vector<8x128xf32>
    %31 = arith.subf %25, %30 : vector<8x128xf32>
    %32 = arith.mulf %31, %31 : vector<8x128xf32>
    %cst_18 = arith.constant dense<0.000000e+00> : vector<8xf32>
    %33 = vector.multi_reduction <add>, %32, %cst_18 [1] : vector<8x128xf32> to vector<8xf32>
    %34 = vector.shape_cast %33 : vector<8xf32> to vector<8x1xf32>
    %cst_19 = arith.constant 1.280000e+02 : f32
    %35 = vector.broadcast %cst_19 : f32 to vector<8x1xf32>
    %36 = arith.divf %34, %35 : vector<8x1xf32>
    %cst_20 = arith.constant 9.99999974E-6 : f32
    %37 = vector.broadcast %cst_20 : f32 to vector<8x1xf32>
    %38 = arith.addf %36, %37 : vector<8x1xf32>
    %39 = math.rsqrt %38 : vector<8x1xf32>
    %40 = vector.broadcast %39 : vector<8x1xf32> to vector<8x128xf32>
    %41 = arith.mulf %31, %40 : vector<8x128xf32>
    %42 = vector.shape_cast %9 : vector<128xf32> to vector<1x128xf32>
    %43 = vector.broadcast %42 : vector<1x128xf32> to vector<8x128xf32>
    %44 = arith.mulf %41, %43 : vector<8x128xf32>
    %45 = vector.shape_cast %11 : vector<128xf32> to vector<1x128xf32>
    %46 = vector.broadcast %45 : vector<1x128xf32> to vector<8x128xf32>
    %47 = arith.addf %44, %46 : vector<8x128xf32>
    %48 = arith.negf %47 : vector<8x128xf32>
    %49 = math.exp %48 : vector<8x128xf32>
    %cst_21 = arith.constant 1.000000e+00 : f32
    %50 = vector.broadcast %cst_21 : f32 to vector<8x128xf32>
    %51 = arith.addf %50, %49 : vector<8x128xf32>
    %52 = arith.divf %50, %51 : vector<8x128xf32>
    %cst_22 = arith.constant 0.333333343 : f32
    %53 = vector.broadcast %cst_22 : f32 to vector<8x128xf32>
    %54 = arith.addf %52, %53 : vector<8x128xf32>
    %55 = arith.mulf %54, %4 : vector<8x128xf32>
    %c0_23 = arith.constant 0 : index
    %c0_24 = arith.constant 0 : index
    %56 = vector.load %arg6[%c0_23, %c0_24] : memref<8x128xf32, #tpu.memory_space<vmem>>, vector<8x128xf32>
    tpu.vector_store %arg6[%c0_23, %c0_24], %55 {strides = array<i32>} : memref<8x128xf32, #tpu.memory_space<vmem>>, vector<8x128xf32>,
    return
  }
  func.func @transform_0(%arg0: i32) -> (i32, i32) {
    %c0_i32 = arith.constant 0 : i32
    %c0_i32_0 = arith.constant 0 : i32
    return %arg0, %c0_i32 : i32, i32
  }
  func.func @transform_1(%arg0: i32) -> (i32, i32) {
    %c0_i32 = arith.constant 0 : i32
    %c0_i32_0 = arith.constant 0 : i32
    return %arg0, %c0_i32 : i32, i32
  }
  func.func @transform_2(%arg0: i32) -> (i32, i32) {
    %c0_i32 = arith.constant 0 : i32
    %c0_i32_0 = arith.constant 0 : i32
    return %arg0, %c0_i32 : i32, i32
  }
  func.func @transform_3(%arg0: i32) -> (i32, i32, i32) {
    %c0_i32 = arith.constant 0 : i32
    %c0_i32_0 = arith.constant 0 : i32
    %c0_i32_1 = arith.constant 0 : i32
    %c0_i32_2 = arith.constant 0 : i32
    return %c0_i32, %c0_i32_0, %c0_i32_1 : i32, i32, i32
  }
  func.func @transform_4(%arg0: i32) -> (i32, i32) {
    %c0_i32 = arith.constant 0 : i32
    %c0_i32_0 = arith.constant 0 : i32
    %c0_i32_1 = arith.constant 0 : i32
    return %c0_i32, %c0_i32_0 : i32, i32
  }
  func.func @transform_5(%arg0: i32) -> (i32, i32) {
    %c0_i32 = arith.constant 0 : i32
    %c0_i32_0 = arith.constant 0 : i32
    return %arg0, %c0_i32 : i32, i32
  }
}

module attributes {stable_mosaic.version = 11 : i64} {
  func.func @gated_fusion_kernel(%arg0: i32, %arg1: memref<8x128xf32, #tpu.memory_space<vmem>>, %arg2: memref<8x128xf32, #tpu.memory_space<vmem>>, %arg3: memref<8x128xf32, #tpu.memory_space<vmem>>, %arg4: memref<3x128x128xf32, #tpu.memory_space<vmem>>, %arg5: memref<3x128xf32, #tpu.memory_space<vmem>>, %arg6: memref<8x128xf32, #tpu.memory_space<vmem>>) attributes {dimension_semantics = [#tpu.dimension_semantics<parallel>], iteration_bounds = array<i64: 2>, scalar_prefetch = 0 : i64, scratch_operands = 0 : i64, tpu.core_type = #tpu.core_type<tc>, window_params = [{transform_indices = @transform_0, window_bounds = array<i64: 8, 128>}, {transform_indices = @transform_1, window_bounds = array<i64: 8, 128>}, {transform_indices = @transform_2, window_bounds = array<i64: 8, 128>}, {pipeline_mode = #tpu.pipeline_mode<synchronous>, transform_indices = @transform_3, window_bounds = array<i64: 3, 128, 128>}, {pipeline_mode = #tpu.pipeline_mode<synchronous>, transform_indices = @transform_4, window_bounds = array<i64: 3, 128>}, {transform_indices = @transform_5, window_bounds = array<i64: 8, 128>}]} {
    %c0 = arith.constant 0 : index
    %c0_0 = arith.constant 0 : index
    %0 = vector.load %arg1[%c0, %c0_0] : memref<8x128xf32, #tpu.memory_space<vmem>>, vector<8x128xf32>
    %c0_1 = arith.constant 0 : index
    %c0_2 = arith.constant 0 : index
    %1 = vector.load %arg2[%c0_1, %c0_2] : memref<8x128xf32, #tpu.memory_space<vmem>>, vector<8x128xf32>
    %c0_3 = arith.constant 0 : index
    %c0_4 = arith.constant 0 : index
    %2 = vector.load %arg3[%c0_3, %c0_4] : memref<8x128xf32, #tpu.memory_space<vmem>>, vector<8x128xf32>
    %3 = arith.addf %0, %1 : vector<8x128xf32>
    %4 = arith.addf %3, %2 : vector<8x128xf32>
    %c0_5 = arith.constant 0 : index
    %c0_6 = arith.constant 0 : index
    %5 = vector.load %arg5[%c0_5, %c0_6] : memref<3x128xf32, #tpu.memory_space<vmem>>, vector<3x128xf32>
    %6 = vector.extract_strided_slice %5 {offsets = [0, 0], sizes = [1, 128], strides = [1, 1]} : vector<3x128xf32> to vector<1x128xf32>
    %7 = vector.shape_cast %6 : vector<1x128xf32> to vector<128xf32>
    %8 = vector.extract_strided_slice %5 {offsets = [1, 0], sizes = [1, 128], strides = [1, 1]} : vector<3x128xf32> to vector<1x128xf32>
    %9 = vector.shape_cast %8 : vector<1x128xf32> to vector<128xf32>
    %10 = vector.extract_strided_slice %5 {offsets = [2, 0], sizes = [1, 128], strides = [1, 1]} : vector<3x128xf32> to vector<1x128xf32>
    %11 = vector.shape_cast %10 : vector<1x128xf32> to vector<128xf32>
    %c0_7 = arith.constant 0 : index
    %c0_8 = arith.constant 0 : index
    %c0_9 = arith.constant 0 : index
    %12 = vector.load %arg4[%c0_7, %c0_8, %c0_9] : memref<3x128x128xf32, #tpu.memory_space<vmem>>, vector<1x128x128xf32>
    %13 = vector.shape_cast %12 : vector<1x128x128xf32> to vector<128x128xf32>
    %cst = arith.constant dense<0.000000e+00> : vector<8x128xf32>
    %14 = tpu.matmul %0, %13, %cst {dimension_numbers = #tpu.dot_dimension_numbers<[1], [0], [0], [1], [0, 0, 1, 1], [], []>} : vector<8x128xf32>, vector<128x128xf32>, vector<8x128xf32> -> vector<8x128xf32>
    %c1 = arith.constant 1 : index
    %c0_10 = arith.constant 0 : index
    %c0_11 = arith.constant 0 : index
    %15 = vector.load %arg4[%c1, %c0_10, %c0_11] : memref<3x128x128xf32, #tpu.memory_space<vmem>>, vector<1x128x128xf32>
    %16 = vector.shape_cast %15 : vector<1x128x128xf32> to vector<128x128xf32>
    %cst_12 = arith.constant dense<0.000000e+00> : vector<8x128xf32>
    %17 = tpu.matmul %1, %16, %cst_12 {dimension_numbers = #tpu.dot_dimension_numbers<[1], [0], [0], [1], [0, 0, 1, 1], [], []>} : vector<8x128xf32>, vector<128x128xf32>, vector<8x128xf32> -> vector<8x128xf32>
    %18 = arith.addf %14, %17 : vector<8x128xf32>
    %c2 = arith.constant 2 : index
    %c0_13 = arith.constant 0 : index
    %c0_14 = arith.constant 0 : index
    %19 = vector.load %arg4[%c2, %c0_13, %c0_14] : memref<3x128x128xf32, #tpu.memory_space<vmem>>, vector<1x128x128xf32>
    %20 = vector.shape_cast %19 : vector<1x128x128xf32> to vector<128x128xf32>
    %cst_15 = arith.constant dense<0.000000e+00> : vector<8x128xf32>
    %21 = tpu.matmul %2, %20, %cst_15 {dimension_numbers = #tpu.dot_dimension_numbers<[1], [0], [0], [1], [0, 0, 1, 1], [], []>} : vector<8x128xf32>, vector<128x128xf32>, vector<8x128xf32> -> vector<8x128xf32>
    %22 = arith.addf %18, %21 : vector<8x128xf32>
    %23 = vector.shape_cast %7 : vector<128xf32> to vector<1x128xf32>
    %24 = vector.broadcast %23 : vector<1x128xf32> to vector<8x128xf32>
    %25 = arith.addf %22, %24 : vector<8x128xf32>
    %cst_16 = arith.constant dense<0.000000e+00> : vector<8xf32>
    %26 = vector.multi_reduction <add>, %25, %cst_16 [1] : vector<8x128xf32> to vector<8xf32>
    %27 = vector.shape_cast %26 : vector<8xf32> to vector<8x1xf32>
    %cst_17 = arith.constant 1.280000e+02 : f32
    %28 = vector.broadcast %cst_17 : f32 to vector<8x1xf32>
    %29 = arith.divf %27, %28 : vector<8x1xf32>
    %30 = vector.broadcast %29 : vector<8x1xf32> to vector<8x128xf32>
    %31 = arith.subf %25, %30 : vector<8x128xf32>
    %32 = arith.mulf %31, %31 : vector<8x128xf32>
    %cst_18 = arith.constant dense<0.000000e+00> : vector<8xf32>
    %33 = vector.multi_reduction <add>, %32, %cst_18 [1] : vector<8x128xf32> to vector<8xf32>
    %34 = vector.shape_cast %33 : vector<8xf32> to vector<8x1xf32>
    %cst_19 = arith.constant 1.280000e+02 : f32
    %35 = vector.broadcast %cst_19 : f32 to vector<8x1xf32>
    %36 = arith.divf %34, %35 : vector<8x1xf32>
    %cst_20 = arith.constant 9.99999974E-6 : f32
    %37 = vector.broadcast %cst_20 : f32 to vector<8x1xf32>
    %38 = arith.addf %36, %37 : vector<8x1xf32>
    %39 = math.rsqrt %38 : vector<8x1xf32>
    %40 = vector.broadcast %39 : vector<8x1xf32> to vector<8x128xf32>
    %41 = arith.mulf %31, %40 : vector<8x128xf32>
    %42 = vector.shape_cast %9 : vector<128xf32> to vector<1x128xf32>
    %43 = vector.broadcast %42 : vector<1x128xf32> to vector<8x128xf32>
    %44 = arith.mulf %41, %43 : vector<8x128xf32>
    %45 = vector.shape_cast %11 : vector<128xf32> to vector<1x128xf32>
    %46 = vector.broadcast %45 : vector<1x128xf32> to vector<8x128xf32>
    %47 = arith.addf %44, %46 : vector<8x128xf32>
    %48 = arith.negf %47 : vector<8x128xf32>
    %49 = math.exp %48 : vector<8x128xf32>
    %cst_21 = arith.constant 1.000000e+00 : f32
    %50 = vector.broadcast %cst_21 : f32 to vector<8x128xf32>
    %51 = arith.addf %50, %49 : vector<8x128xf32>
    %52 = arith.divf %50, %51 : vector<8x128xf32>
    %cst_22 = arith.constant 0.333333343 : f32
    %53 = vector.broadcast %cst_22 : f32 to vector<8x128xf32>
    %54 = arith.addf %52, %53 : vector<8x128xf32>
    %55 = arith.mulf %54, %4 : vector<8x128xf32>
    %c0_23 = arith.constant 0 : index
    %c0_24 = arith.constant 0 : index
    %56 = vector.load %arg6[%c0_23, %c0_24] : memref<8x128xf32, #tpu.memory_space<vmem>>, vector<8x128xf32>
    tpu.vector_store %arg6[%c0_23, %c0_24], %55 {strides = array<i32>} : memref<8x128xf32, #tpu.memory_space<vmem>>, vector<8x128xf32>,
    return
  }
  func.func @transform_0(%arg0: i32) -> (i32, i32) {
    %c0_i32 = arith.constant 0 : i32
    %c0_i32_0 = arith.constant 0 : i32
    return %arg0, %c0_i32 : i32, i32
  }
  func.func @transform_1(%arg0: i32) -> (i32, i32) {
    %c0_i32 = arith.constant 0 : i32
    %c0_i32_0 = arith.constant 0 : i32
    return %arg0, %c0_i32 : i32, i32
  }
  func.func @transform_2(%arg0: i32) -> (i32, i32) {
    %c0_i32 = arith.constant 0 : i32
    %c0_i32_0 = arith.constant 0 : i32
    return %arg0, %c0_i32 : i32, i32
  }
  func.func @transform_3(%arg0: i32) -> (i32, i32, i32) {
    %c0_i32 = arith.constant 0 : i32
    %c0_i32_0 = arith.constant 0 : i32
    %c0_i32_1 = arith.constant 0 : i32
    %c0_i32_2 = arith.constant 0 : i32
    return %c0_i32, %c0_i32_0, %c0_i32_1 : i32, i32, i32
  }
  func.func @transform_4(%arg0: i32) -> (i32, i32) {
    %c0_i32 = arith.constant 0 : i32
    %c0_i32_0 = arith.constant 0 : i32
    %c0_i32_1 = arith.constant 0 : i32
    return %c0_i32, %c0_i32_0 : i32, i32
  }
  func.func @transform_5(%arg0: i32) -> (i32, i32) {
    %c0_i32 = arith.constant 0 : i32
    %c0_i32_0 = arith.constant 0 : i32
    return %arg0, %c0_i32 : i32, i32
  }
}

</mosaic_0001>

<llo_original>
// kernel: tpu_custom_call.1
$region0: #{tpu_custom_call.1}
  #allocation0 [shape = 'u32[]', space=smem, size = 0x4, offset = 0x4, fixed_abs, tag = 'smem constant byte address 0x4 - core index']
  #allocation1 [shape = 'u32[72,128]{1,0:T(1,128)}', space=vmem, size = 0x9000, scoped, tag = 'internal scratch']
  %s0 = inlined_call_operand.hbm [shape: f32[16,128], index: 0, kind: input, shape index: {}]
  %s1 = inlined_call_operand.hbm [shape: f32[16,128], index: 1, kind: input, shape index: {}]
  %s2 = inlined_call_operand.hbm [shape: f32[16,128], index: 2, kind: input, shape index: {}]
  %s3 = inlined_call_operand.hbm [shape: f32[3,128,128], index: 3, kind: input, shape index: {}]
  %s4 = inlined_call_operand.hbm [shape: f32[3,128], index: 4, kind: input, shape index: {}]
  %s5 = inlined_call_operand.hbm [shape: f32[16,128], index: 5, kind: output, shape index: {}]
  %s6 = sld [smem:[#allocation0]]
  $region73: #{tpu_custom_call.1} parent=0
    _
  %s8 = ssub.s32 1, %s6
  %s9 = scalar_select 0, %s8, %s6
  $region1: #{tpu_custom_call.1} parent=0
    #allocation2 [shape = 'u8[8192]{0}', space=vmem, size = 0x2000, scoped, tag = 'input window, operand 0']
    #allocation3 [shape = 's32[2]{0}', space=sflag, size = 0x8, scoped, tag = 'scoped memory for tpu_custom_call.1']
    #allocation4 [shape = 's32[2]{0}', space=sflag, size = 0x8, scoped, tag = 'scoped memory for tpu_custom_call.1']
    #allocation5 [shape = 'u8[8192]{0}', space=vmem, size = 0x2000, scoped, tag = 'input window, operand 1']
    #allocation6 [shape = 's32[2]{0}', space=sflag, size = 0x8, scoped, tag = 'scoped memory for tpu_custom_call.1']
    #allocation7 [shape = 'u8[8192]{0}', space=vmem, size = 0x2000, scoped, tag = 'input window, operand 2']
    #allocation8 [shape = 'u8[196608]{0}', space=vmem, size = 0x30000, scoped, tag = 'input window, operand 3, single buffered']
    #allocation9 [shape = 's32[1]{0}', space=sflag, size = 0x4, scoped, tag = 'scoped memory for tpu_custom_call.1']
    #allocation10 [shape = 'u8[2048]{0}', space=vmem, size = 0x800, scoped, tag = 'input window, operand 4, single buffered']
    #allocation11 [shape = 'u8[8192]{0}', space=vmem, size = 0x2000, scoped, tag = 'output window, operand 0']
    %10 = vsyncpa [#allocation3], 0
    %s11 = scalar_lea.sflag [#allocation3], 1
    %12 = vsyncpa %s11, 0
    %13 = vsyncpa [#allocation6], 0
    %s14 = scalar_lea.sflag [#allocation6], 1
    %15 = vsyncpa %s14, 0
    %16 = vsyncpa [#allocation9], 0
    %17 = vsyncpa [#allocation4], 0
    %s18 = scalar_lea.sflag [#allocation4], 1
    %19 = vsyncpa %s18, 0
    loop: start=0, step=1, limit=4
    $region2: #{tpu_custom_call.1} parent=1 // loop_pre_header
      _
    $region3: #{tpu_custom_call.1} parent=1 // loop_header
      %s21 = sphi 0, %s25
      %p22 = scmp.ge.s32.totalorder %s21, 4
      %s31 = sphi 0, %s33
      %s34 = sphi 0, %s31
      %s35 = sphi 0, %s34
      %s51 = sphi 0, %s35
      %s57 = sphi 0, %s59
      %s60 = sphi 0, %s57
      %s61 = sphi 0, %s60
      %s77 = sphi 0, %s61
      %s83 = sphi 0, %s85
      %s86 = sphi 0, %s83
      %s87 = sphi 0, %s86
      %s103 = sphi 0, %s87
      %s107 = sphi 0, %s107
      %s109 = sphi 0, %s107
      %s110 = sphi 0, %s109
      %s124 = sphi 0, %s110
      %s128 = sphi 0, %s128
      %s130 = sphi 0, %s128
      %s131 = sphi 0, %s130
      %s145 = sphi 0, %s131
      %s151 = sphi 0, %s153
      %s154 = sphi 0, %s151
      %s155 = sphi 0, %s154
      %s171 = sphi 0, %s155
    $region4: #{tpu_custom_call.1} parent=1 // loop_header_branch
      %24 = sbr.rel (%p22) target = $region8
    $region5: #{tpu_custom_call.1} parent=1 // loop_body
      %s26 = ssub.s32 %s21, 1
      %s27 = ssub.s32 %s21, 2
      %s28 = sadd.s32 %s21, 1
      %s29 = ssub.s32 %s21, %s28
      %p30 = scmp.eq.s32.totalorder %s29, 0
      %s32 = sadd.s32 %s31, 1
      %s33 = scalar_select %p30, %s31, %s32
      %p36 = pneg %p30
      %p37 = scmp.eq.s32.totalorder %s21, 1
      %p38 = por %p36, %p37
      %p39 = scmp.ne.s32.totalorder %s31, %s34
      %p40 = scmp.eq.s32.totalorder %s21, 0
      %p41 = por %p39, %p40
      %p42 = scmp.ne.s32.totalorder %s31, %s34
      %p43 = scmp.eq.s32.totalorder %s26, 1
      %p44 = por %p42, %p43
      %p45 = scmp.ne.s32.totalorder %s34, %s35
      %p46 = scmp.eq.s32.totalorder %s26, 0
      %p47 = por %p45, %p46
      %p48 = scmp.ne.s32.totalorder %s34, %s35
      %p49 = scmp.eq.s32.totalorder %s27, 1
      %p50 = por %p48, %p49
      %p52 = scmp.ne.s32.totalorder %s35, %s51
      %p53 = scmp.eq.s32.totalorder %s27, 0
      %p54 = por %p52, %p53
      %s55 = ssub.s32 %s21, %s28
      %p56 = scmp.eq.s32.totalorder %s55, 0
      %s58 = sadd.s32 %s57, 1
      %s59 = scalar_select %p56, %s57, %s58
      %p62 = pneg %p56
      %p63 = scmp.eq.s32.totalorder %s21, 1
      %p64 = por %p62, %p63
      %p65 = scmp.ne.s32.totalorder %s57, %s60
      %p66 = scmp.eq.s32.totalorder %s21, 0
      %p67 = por %p65, %p66
      %p68 = scmp.ne.s32.totalorder %s57, %s60
      %p69 = scmp.eq.s32.totalorder %s26, 1
      %p70 = por %p68, %p69
      %p71 = scmp.ne.s32.totalorder %s60, %s61
      %p72 = scmp.eq.s32.totalorder %s26, 0
      %p73 = por %p71, %p72
      %p74 = scmp.ne.s32.totalorder %s60, %s61
      %p75 = scmp.eq.s32.totalorder %s27, 1
      %p76 = por %p74, %p75
      %p78 = scmp.ne.s32.totalorder %s61, %s77
      %p79 = scmp.eq.s32.totalorder %s27, 0
      %p80 = por %p78, %p79
      %s81 = ssub.s32 %s21, %s28
      %p82 = scmp.eq.s32.totalorder %s81, 0
      %s84 = sadd.s32 %s83, 1
      %s85 = scalar_select %p82, %s83, %s84
      %p88 = pneg %p82
      %p89 = scmp.eq.s32.totalorder %s21, 1
      %p90 = por %p88, %p89
      %p91 = scmp.ne.s32.totalorder %s83, %s86
      %p92 = scmp.eq.s32.totalorder %s21, 0
      %p93 = por %p91, %p92
      %p94 = scmp.ne.s32.totalorder %s83, %s86
      %p95 = scmp.eq.s32.totalorder %s26, 1
      %p96 = por %p94, %p95
      %p97 = scmp.ne.s32.totalorder %s86, %s87
      %p98 = scmp.eq.s32.totalorder %s26, 0
      %p99 = por %p97, %p98
      %p100 = scmp.ne.s32.totalorder %s86, %s87
      %p101 = scmp.eq.s32.totalorder %s27, 1
      %p102 = por %p100, %p101
      %p104 = scmp.ne.s32.totalorder %s87, %s103
      %p105 = scmp.eq.s32.totalorder %s27, 0
      %p106 = por %p104, %p105
      %s108 = sadd.s32 %s107, 1
      %p111 = scmp.eq.s32.totalorder %s21, 1
      %p112 = scmp.ne.s32.totalorder %s107, %s109
      %p113 = scmp.eq.s32.totalorder %s21, 0
      %p114 = por %p112, %p113
      %p115 = scmp.ne.s32.totalorder %s107, %s109
      %p116 = scmp.eq.s32.totalorder %s26, 1
      %p117 = por %p115, %p116
      %p118 = scmp.ne.s32.totalorder %s109, %s110
      %p119 = scmp.eq.s32.totalorder %s26, 0
      %p120 = por %p118, %p119
      %p121 = scmp.ne.s32.totalorder %s109, %s110
      %p122 = scmp.eq.s32.totalorder %s27, 1
      %p123 = por %p121, %p122
      %p125 = scmp.ne.s32.totalorder %s110, %s124
      %p126 = scmp.eq.s32.totalorder %s27, 0
      %p127 = por %p125, %p126
      %s129 = sadd.s32 %s128, 1
      %p132 = scmp.eq.s32.totalorder %s21, 1
      %p133 = scmp.ne.s32.totalorder %s128, %s130
      %p134 = scmp.eq.s32.totalorder %s21, 0
      %p135 = por %p133, %p134
      %p136 = scmp.ne.s32.totalorder %s128, %s130
      %p137 = scmp.eq.s32.totalorder %s26, 1
      %p138 = por %p136, %p137
      %p139 = scmp.ne.s32.totalorder %s130, %s131
      %p140 = scmp.eq.s32.totalorder %s26, 0
      %p141 = por %p139, %p140
      %p142 = scmp.ne.s32.totalorder %s130, %s131
      %p143 = scmp.eq.s32.totalorder %s27, 1
      %p144 = por %p142, %p143
      %p146 = scmp.ne.s32.totalorder %s131, %s145
      %p147 = scmp.eq.s32.totalorder %s27, 0
      %p148 = por %p146, %p147
      %s149 = ssub.s32 %s21, %s28
      %p150 = scmp.eq.s32.totalorder %s149, 0
      %s152 = sadd.s32 %s151, 1
      %s153 = scalar_select %p150, %s151, %s152
      %p156 = pneg %p150
      %p157 = scmp.eq.s32.totalorder %s21, 1
      %p158 = por %p156, %p157
      %p159 = scmp.ne.s32.totalorder %s151, %s154
      %p160 = scmp.eq.s32.totalorder %s21, 0
      %p161 = por %p159, %p160
      %p162 = scmp.ne.s32.totalorder %s151, %s154
      %p163 = scmp.eq.s32.totalorder %s26, 1
      %p164 = por %p162, %p163
      %p165 = scmp.ne.s32.totalorder %s154, %s155
      %p166 = scmp.eq.s32.totalorder %s26, 0
      %p167 = por %p165, %p166
      %p168 = scmp.ne.s32.totalorder %s154, %s155
      %p169 = scmp.eq.s32.totalorder %s27, 1
      %p170 = por %p168, %p169
      %p172 = scmp.ne.s32.totalorder %s155, %s171
      %p173 = scmp.eq.s32.totalorder %s27, 0
      %p174 = por %p172, %p173
      %p175 = scmp.le.s32.totalorder 1, %s21
      %p176 = scmp.lt.s32.totalorder %s21, 3
      %p177 = pnand %p175, %p176
      %p178 = pneg %p177
      // Predicated region
      $region9: #{tpu_custom_call.1} parent=5 // pred_check
        _
      $region10: #{tpu_custom_call.1} parent=5 // pred_check_branch
        %180 = sbr.rel (%p177) target = $region12
      $region11: #{tpu_custom_call.1} parent=5 // pred_region
        %s181 = ssub.s32 %s21, 1
        // Predicated region
        $region13: #{tpu_custom_call.1} parent=11 // pred_check
          %p182 = pneg %p120
        $region14: #{tpu_custom_call.1} parent=11 // pred_check_branch
          %184 = sbr.rel (%p182) target = $region16
        $region15: #{tpu_custom_call.1} parent=11 // pred_region
          %186 = vsyncadd [#allocation9], 0
          %s187 = sshll.u32 %s3, 4
          %s188 = int_to_ptr.hbm [resolvable:$true] %s187
          %s189 = sshll.u32 [#allocation8], 4
          %s190 = int_to_ptr.vmem [resolvable:$true] %s189
          %195 = dma.hbm_to_vmem [thread:$0]  %s188, 6144, %s190, [#allocation9], 128, 128, 8
        $region16: #{tpu_custom_call.1} parent=11 // pred_fallthru
          _
        // Predicated region
        $region17: #{tpu_custom_call.1} parent=11 // pred_check
          %p196 = pneg %p141
        $region18: #{tpu_custom_call.1} parent=11 // pred_check_branch
          %198 = sbr.rel (%p196) target = $region20
        $region19: #{tpu_custom_call.1} parent=11 // pred_region
          %200 = vsyncadd [#allocation9], 0
          %s202 = sshll.u32 %s4, 4
          %s203 = int_to_ptr.hbm [resolvable:$true] %s202
          %s204 = sshll.u32 [#allocation10], 4
          %s205 = int_to_ptr.vmem [resolvable:$true] %s204
          %207 = dma.hbm_to_vmem [thread:$0]  %s203, 64, %s205, [#allocation9]
        $region20: #{tpu_custom_call.1} parent=11 // pred_fallthru
          _
      $region12: #{tpu_custom_call.1} parent=5 // pred_fallthru
        _
      %p208 = scmp.lt.s32.totalorder %s21, 2
      // Predicated region
      $region21: #{tpu_custom_call.1} parent=5 // pred_check
        %p209 = pneg %p208
      $region22: #{tpu_custom_call.1} parent=5 // pred_check_branch
        %211 = sbr.rel (%p209) target = $region24
      $region23: #{tpu_custom_call.1} parent=5 // pred_region
        // Predicated region
        $region25: #{tpu_custom_call.1} parent=23 // pred_check
          %p212 = pneg %p41
        $region26: #{tpu_custom_call.1} parent=23 // pred_check_branch
          %214 = sbr.rel (%p212) target = $region28
        $region27: #{tpu_custom_call.1} parent=23 // pred_region
          %s215 = sand.u32 %s31, 1
          %s216 = scalar_lea.sflag [#allocation3], %s215
          %s217 = sand.u32 %s31, 1
          %s218 = smul.addr %s217, 8
          %s219 = scalar_lea.vmem [#allocation2], %s218
          %221 = vsyncadd %s216, 0
          %s222 = smul.addr %s21, 8
          %s223 = scalar_lea.hbm %s0, %s222
          %s225 = sshll.u32 %s223, 4
          %s226 = int_to_ptr.hbm [resolvable:$true] %s225
          %s227 = sshll.u32 %s219, 4
          %s228 = int_to_ptr.vmem [resolvable:$true] %s227
          %230 = dma.hbm_to_vmem [thread:$0]  %s226, 128, %s228, %s216
        $region28: #{tpu_custom_call.1} parent=23 // pred_fallthru
          _
        // Predicated region
        $region29: #{tpu_custom_call.1} parent=23 // pred_check
          %p231 = pneg %p67
        $region30: #{tpu_custom_call.1} parent=23 // pred_check_branch
          %233 = sbr.rel (%p231) target = $region32
        $region31: #{tpu_custom_call.1} parent=23 // pred_region
          %s234 = sand.u32 %s21, 1
          %s235 = scalar_lea.sflag [#allocation6], %s234
          %s236 = sand.u32 %s57, 1
          %s237 = smul.addr %s236, 8
          %s238 = scalar_lea.vmem [#allocation5], %s237
          %240 = vsyncadd %s235, 0
          %s241 = smul.addr %s21, 8
          %s242 = scalar_lea.hbm %s1, %s241
          %s244 = sshll.u32 %s242, 4
          %s245 = int_to_ptr.hbm [resolvable:$true] %s244
          %s246 = sshll.u32 %s238, 4
          %s247 = int_to_ptr.vmem [resolvable:$true] %s246
          %249 = dma.hbm_to_vmem [thread:$0]  %s245, 128, %s247, %s235
        $region32: #{tpu_custom_call.1} parent=23 // pred_fallthru
          _
        // Predicated region
        $region33: #{tpu_custom_call.1} parent=23 // pred_check
          %p250 = pneg %p93
        $region34: #{tpu_custom_call.1} parent=23 // pred_check_branch
          %252 = sbr.rel (%p250) target = $region36
        $region35: #{tpu_custom_call.1} parent=23 // pred_region
          %s253 = sand.u32 %s21, 1
          %s254 = scalar_lea.sflag [#allocation6], %s253
          %s255 = sand.u32 %s83, 1
          %s256 = smul.addr %s255, 8
          %s257 = scalar_lea.vmem [#allocation7], %s256
          %259 = vsyncadd %s254, 0
          %s260 = smul.addr %s21, 8
          %s261 = scalar_lea.hbm %s2, %s260
          %s263 = sshll.u32 %s261, 4
          %s264 = int_to_ptr.hbm [resolvable:$true] %s263
          %s265 = sshll.u32 %s257, 4
          %s266 = int_to_ptr.vmem [resolvable:$true] %s265
          %268 = dma.hbm_to_vmem [thread:$0]  %s264, 128, %s266, %s254
        $region36: #{tpu_custom_call.1} parent=23 // pred_fallthru
          _
      $region24: #{tpu_custom_call.1} parent=5 // pred_fallthru
        _
      %p269 = scmp.le.s32.totalorder 1, %s21
      %p270 = scmp.lt.s32.totalorder %s21, 3
      %p271 = pnand %p269, %p270
      %p272 = pneg %p271
      // Predicated region
      $region37: #{tpu_custom_call.1} parent=5 // pred_check
        _
      $region38: #{tpu_custom_call.1} parent=5 // pred_check_branch
        %274 = sbr.rel (%p271) target = $region40
      $region39: #{tpu_custom_call.1} parent=5 // pred_region
        %s275 = ssub.s32 %s21, 1
        %s276 = sand.u32 %s34, 1
        %s277 = scalar_lea.sflag [#allocation3], %s276
        %s278 = sand.u32 %s34, 1
        %s279 = smul.addr %s278, 8
        %s280 = scalar_lea.vmem [#allocation2], %s279
        // Predicated region
        $region41: #{tpu_custom_call.1} parent=39 // pred_check
          %p281 = pneg %p47
        $region42: #{tpu_custom_call.1} parent=39 // pred_check_branch
          %283 = sbr.rel (%p281) target = $region44
        $region43: #{tpu_custom_call.1} parent=39 // pred_region
          %285 = dma.done %s277, 128
        $region44: #{tpu_custom_call.1} parent=39 // pred_fallthru
          _
        %s286 = sand.u32 %s26, 1
        %s287 = scalar_lea.sflag [#allocation6], %s286
        %s288 = sand.u32 %s60, 1
        %s289 = smul.addr %s288, 8
        %s290 = scalar_lea.vmem [#allocation5], %s289
        // Predicated region
        $region45: #{tpu_custom_call.1} parent=39 // pred_check
          %p291 = pneg %p73
        $region46: #{tpu_custom_call.1} parent=39 // pred_check_branch
          %293 = sbr.rel (%p291) target = $region48
        $region47: #{tpu_custom_call.1} parent=39 // pred_region
          %295 = dma.done %s287, 128
        $region48: #{tpu_custom_call.1} parent=39 // pred_fallthru
          _
        %s296 = sand.u32 %s26, 1
        %s297 = scalar_lea.sflag [#allocation6], %s296
        %s298 = sand.u32 %s86, 1
        %s299 = smul.addr %s298, 8
        %s300 = scalar_lea.vmem [#allocation7], %s299
        // Predicated region
        $region49: #{tpu_custom_call.1} parent=39 // pred_check
          %p301 = pneg %p99
        $region50: #{tpu_custom_call.1} parent=39 // pred_check_branch
          %303 = sbr.rel (%p301) target = $region52
        $region51: #{tpu_custom_call.1} parent=39 // pred_region
          %305 = dma.done %s297, 128
        $region52: #{tpu_custom_call.1} parent=39 // pred_fallthru
          _
        // Predicated region
        $region53: #{tpu_custom_call.1} parent=39 // pred_check
          %p306 = pneg %p120
        $region54: #{tpu_custom_call.1} parent=39 // pred_check_branch
          %308 = sbr.rel (%p306) target = $region56
        $region55: #{tpu_custom_call.1} parent=39 // pred_region
          %310 = dma.done [#allocation9], 6144
        $region56: #{tpu_custom_call.1} parent=39 // pred_fallthru
          _
        // Predicated region
        $region57: #{tpu_custom_call.1} parent=39 // pred_check
          %p311 = pneg %p141
        $region58: #{tpu_custom_call.1} parent=39 // pred_check_branch
          %313 = sbr.rel (%p311) target = $region60
        $region59: #{tpu_custom_call.1} parent=39 // pred_region
          %315 = dma.done [#allocation9], 64
        $region60: #{tpu_custom_call.1} parent=39 // pred_fallthru
          _
        %s316 = sand.u32 %s34, 1
        %s317 = scalar_lea.sflag [#allocation3], %s316
        %s318 = sand.u32 %s34, 1
        %s319 = smul.addr %s318, 8
        %s320 = scalar_lea.vmem [#allocation2], %s319
        %p321 = pneg %p47
        %p322 = pneg %p44
        %s323 = sand.u32 %s26, 1
        %s324 = scalar_lea.sflag [#allocation6], %s323
        %s325 = sand.u32 %s60, 1
        %s326 = smul.addr %s325, 8
        %s327 = scalar_lea.vmem [#allocation5], %s326
        %p328 = pneg %p73
        %p329 = pneg %p70
        %s330 = sand.u32 %s26, 1
        %s331 = scalar_lea.sflag [#allocation6], %s330
        %s332 = sand.u32 %s86, 1
        %s333 = smul.addr %s332, 8
        %s334 = scalar_lea.vmem [#allocation7], %s333
        %p335 = pneg %p99
        %p336 = pneg %p96
        %p337 = pneg %p120
        %p338 = pneg %p117
        %p339 = pneg %p141
        %p340 = pneg %p138
        %p341 = pneg %p167
        %p342 = pneg %p164
        %s343 = sand.u32 %s154, 1
        %s344 = scalar_lea.sflag [#allocation4], %s343
        %s345 = sand.u32 %s154, 1
        %s346 = smul.addr %s345, 8
        %s347 = scalar_lea.vmem [#allocation11], %s346
        %v348 = vld [vmem:[%s280] sm:$0xff]
        %v349 = vld [vmem:[%s290] sm:$0xff]
        %v350 = vld [vmem:[%s300] sm:$0xff]
        %v351 = vadd.f32 %v348, %v349
        %v352 = vadd.f32 %v351, %v350
        %v353 = vld [vmem:[#allocation10] sm:$0x7]
        %v354 = vld [vmem:[#allocation8] sm:$0xff]
        %v355 = vld [vmem:[#allocation8 + $0x8] sm:$0xff]
        %v356 = vld [vmem:[#allocation8 + $0x10] sm:$0xff]
        %v357 = vld [vmem:[#allocation8 + $0x18] sm:$0xff]
        %v358 = vld [vmem:[#allocation8 + $0x20] sm:$0xff]
        %v359 = vld [vmem:[#allocation8 + $0x28] sm:$0xff]
        %v360 = vld [vmem:[#allocation8 + $0x30] sm:$0xff]
        %v361 = vld [vmem:[#allocation8 + $0x38] sm:$0xff]
        %v362 = vld [vmem:[#allocation8 + $0x40] sm:$0xff]
        %v363 = vld [vmem:[#allocation8 + $0x48] sm:$0xff]
        %v364 = vld [vmem:[#allocation8 + $0x50] sm:$0xff]
        %v365 = vld [vmem:[#allocation8 + $0x58] sm:$0xff]
        %v366 = vld [vmem:[#allocation8 + $0x60] sm:$0xff]
        %v367 = vld [vmem:[#allocation8 + $0x68] sm:$0xff]
        %v368 = vld [vmem:[#allocation8 + $0x70] sm:$0xff]
        %v369 = vld [vmem:[#allocation8 + $0x78] sm:$0xff]
        %s370 = scalar_lea.vmem [#allocation8], 128
        %v371 = vld [vmem:[%s370] sm:$0xff]
        %v372 = vld [vmem:[%s370 + $0x8] sm:$0xff]
        %v373 = vld [vmem:[%s370 + $0x10] sm:$0xff]
        %v374 = vld [vmem:[%s370 + $0x18] sm:$0xff]
        %v375 = vld [vmem:[%s370 + $0x20] sm:$0xff]
        %v376 = vld [vmem:[%s370 + $0x28] sm:$0xff]
        %v377 = vld [vmem:[%s370 + $0x30] sm:$0xff]
        %v378 = vld [vmem:[%s370 + $0x38] sm:$0xff]
        %v379 = vld [vmem:[%s370 + $0x40] sm:$0xff]
        %v380 = vld [vmem:[%s370 + $0x48] sm:$0xff]
        %v381 = vld [vmem:[%s370 + $0x50] sm:$0xff]
        %v382 = vld [vmem:[%s370 + $0x58] sm:$0xff]
        %v383 = vld [vmem:[%s370 + $0x60] sm:$0xff]
        %v384 = vld [vmem:[%s370 + $0x68] sm:$0xff]
        %v385 = vld [vmem:[%s370 + $0x70] sm:$0xff]
        %v386 = vld [vmem:[%s370 + $0x78] sm:$0xff]
        %387 = vmatpush.msra.mxu0 %v386
        %388 = vmatpush.msra.mxu0 %v385
        %389 = vmatpush.msra.mxu0 %v384
        %390 = vmatpush.msra.mxu0 %v383
        %391 = vmatpush.msra.mxu0 %v382
        %392 = vmatpush.msra.mxu0 %v381
        %393 = vmatpush.msra.mxu0 %v380
        %394 = vmatpush.msra.mxu0 %v379
        %395 = vmatpush.msra.mxu0 %v378
        %396 = vmatpush.msra.mxu0 %v377
        %397 = vmatpush.msra.mxu0 %v376
        %398 = vmatpush.msra.mxu0 %v375
        %399 = vmatpush.msra.mxu0 %v374
        %400 = vmatpush.msra.mxu0 %v373
        %401 = vmatpush.msra.mxu0 %v372
        %402 = vmatpush.msra.mxu0 %v371
        %403 = vmatmul.f32.gmra.mxu0 %v349
        %v404 = vpop.f32.mrf.mxu0
        %v405 = vadd.f32 0.0, %v404
        %406 = vdwg.mxu0
        %407 = vmatpush.msra.mxu0 %v369
        %408 = vmatpush.msra.mxu0 %v368
        %409 = vmatpush.msra.mxu0 %v367
        %410 = vmatpush.msra.mxu0 %v366
        %411 = vmatpush.msra.mxu0 %v365
        %412 = vmatpush.msra.mxu0 %v364
        %413 = vmatpush.msra.mxu0 %v363
        %414 = vmatpush.msra.mxu0 %v362
        %415 = vmatpush.msra.mxu0 %v361
        %416 = vmatpush.msra.mxu0 %v360
        %417 = vmatpush.msra.mxu0 %v359
        %418 = vmatpush.msra.mxu0 %v358
        %419 = vmatpush.msra.mxu0 %v357
        %420 = vmatpush.msra.mxu0 %v356
        %421 = vmatpush.msra.mxu0 %v355
        %422 = vmatpush.msra.mxu0 %v354
        %423 = vmatmul.f32.gmra.mxu0 %v348
        %v424 = vpop.f32.mrf.mxu0
        %v425 = vadd.f32 %v405, %v424
        %426 = vdwg.mxu0
        %s427 = scalar_lea.vmem [#allocation8], 256
        %v428 = vld [vmem:[%s427] sm:$0xff]
        %v429 = vld [vmem:[%s427 + $0x8] sm:$0xff]
        %v430 = vld [vmem:[%s427 + $0x10] sm:$0xff]
        %v431 = vld [vmem:[%s427 + $0x18] sm:$0xff]
        %v432 = vld [vmem:[%s427 + $0x20] sm:$0xff]
        %v433 = vld [vmem:[%s427 + $0x28] sm:$0xff]
        %v434 = vld [vmem:[%s427 + $0x30] sm:$0xff]
        %v435 = vld [vmem:[%s427 + $0x38] sm:$0xff]
        %v436 = vld [vmem:[%s427 + $0x40] sm:$0xff]
        %v437 = vld [vmem:[%s427 + $0x48] sm:$0xff]
        %v438 = vld [vmem:[%s427 + $0x50] sm:$0xff]
        %v439 = vld [vmem:[%s427 + $0x58] sm:$0xff]
        %v440 = vld [vmem:[%s427 + $0x60] sm:$0xff]
        %v441 = vld [vmem:[%s427 + $0x68] sm:$0xff]
        %v442 = vld [vmem:[%s427 + $0x70] sm:$0xff]
        %v443 = vld [vmem:[%s427 + $0x78] sm:$0xff]
        %444 = vmatpush.msra.mxu0 %v443
        %445 = vmatpush.msra.mxu0 %v442
        %446 = vmatpush.msra.mxu0 %v441
        %447 = vmatpush.msra.mxu0 %v440
        %448 = vmatpush.msra.mxu0 %v439
        %449 = vmatpush.msra.mxu0 %v438
        %450 = vmatpush.msra.mxu0 %v437
        %451 = vmatpush.msra.mxu0 %v436
        %452 = vmatpush.msra.mxu0 %v435
        %453 = vmatpush.msra.mxu0 %v434
        %454 = vmatpush.msra.mxu0 %v433
        %455 = vmatpush.msra.mxu0 %v432
        %456 = vmatpush.msra.mxu0 %v431
        %457 = vmatpush.msra.mxu0 %v430
        %458 = vmatpush.msra.mxu0 %v429
        %459 = vmatpush.msra.mxu0 %v428
        %460 = vmatmul.f32.gmra.mxu0 %v350
        %v461 = vpop.f32.mrf.mxu0
        %v462 = vadd.f32 0.0, %v461
        %463 = vdwg.mxu0
        %v464 = vadd.f32 %v425, %v462
        %v465 = vperm.slane %v353, 0
        %v466 = vadd.f32 %v464, %v465
        %467 = vadd.xlane.f32.xlu0 %v466
        %v468 = vpop.xlane.xlu0 %467
        %v469 = vrcp.pop 128.0
        %v470 = vmul.f32 128.0, %v469
        %v471 = vsub.f32 1.0, %v470
        %v472 = vmul.f32 %v469, %v471
        %v473 = vadd.f32 %v469, %v472
        %vm474 = vweird.f32 %v469
        %v475 = vsel %vm474, %v469, %v473
        %v476 = vmul.f32 %v468, %v475
        %v477 = vsub.f32 %v466, %v476
        %v478 = vmul.f32 %v477, %v477
        %479 = vadd.xlane.f32.xlu0 %v478
        %v480 = vpop.xlane.xlu0 %479
        %v481 = vmul.f32 %v480, %v475
        %v482 = vadd.f32 %v481, 1e-05
        %v483 = vrsqrt.pop %v482
        %v484 = vmul.f32 %v483, %v482
        %v485 = vmul.f32 %v484, %v483
        %v486 = vmul.f32 0.5, %v485
        %v487 = vsub.f32 1.5, %v486
        %v488 = vmul.f32 %v483, %v487
        %vm489 = vweird.f32 %v482
        %vm490 = vweird.f32 %v483
        %vm491 = vmor %vm489, %vm490
        %v492 = vsel %vm491, %v483, %v488
        %v493 = vmul.f32 %v477, %v492
        %v494 = vperm.slane %v353, 1
        %v495 = vmul.f32 %v493, %v494
        %v496 = vperm.slane %v353, 2
        %v497 = vadd.f32 %v495, %v496
        %v498 = vxor.u32 %v497, 2147483648
        %v499 = vmul.f32 %v498, 1.442695
        %v500 = vpow.pop %v499
        %v501 = vadd.f32 %v500, 1.0
        %v502 = vrcp.pop %v501
        %v503 = vmul.f32 %v501, %v502
        %v504 = vsub.f32 1.0, %v503
        %v505 = vmul.f32 %v502, %v504
        %v506 = vadd.f32 %v502, %v505
        %vm507 = vweird.f32 %v501
        %vm508 = vweird.f32 %v502
        %vm509 = vmor %vm507, %vm508
        %v510 = vsel %vm509, %v502, %v506
        %v511 = vand.u32 2147483647, %v501
        %vm512 = vcmp.eq.f32.partialorder %v511, 8.507059e+37
        %v513 = vand.u32 %v501, 2147483648
        %v514 = vor.u32 1.1754944e-38, %v513
        %v515 = vsel %vm512, %v514, %v510
        %v516 = vmul.f32 1.0, %v515
        %v517 = vadd.f32 %v516, 0.33333334
        %v518 = vmul.f32 %v517, %v352
        %519 = vst [vmem:[%s347] sm:$0xff] %v518
        %s520 = sand.u32 %s154, 1
        %s521 = scalar_lea.sflag [#allocation4], %s520
        %s522 = sand.u32 %s154, 1
        %s523 = smul.addr %s522, 8
        %s524 = scalar_lea.vmem [#allocation11], %s523
        // Predicated region
        $region61: #{tpu_custom_call.1} parent=39 // pred_check
          %p525 = pneg %p164
        $region62: #{tpu_custom_call.1} parent=39 // pred_check_branch
          %527 = sbr.rel (%p525) target = $region64
        $region63: #{tpu_custom_call.1} parent=39 // pred_region
          %529 = vsyncadd %s521, 0
          %s530 = smul.addr %s26, 8
          %s531 = scalar_lea.hbm %s5, %s530
          %s533 = sshll.u32 %s524, 4
          %s534 = int_to_ptr.vmem [resolvable:$true] %s533
          %s535 = sshll.u32 %s531, 4
          %s536 = int_to_ptr.hbm [resolvable:$true] %s535
          %538 = dma.vmem_to_hbm [thread:$0]  %s534, 128, %s536, %s521
        $region64: #{tpu_custom_call.1} parent=39 // pred_fallthru
          _
      $region40: #{tpu_custom_call.1} parent=5 // pred_fallthru
        _
      %p539 = scmp.le.s32.totalorder 2, %s21
      // Predicated region
      $region65: #{tpu_custom_call.1} parent=5 // pred_check
        %p540 = pneg %p539
      $region66: #{tpu_custom_call.1} parent=5 // pred_check_branch
        %542 = sbr.rel (%p540) target = $region68
      $region67: #{tpu_custom_call.1} parent=5 // pred_region
        %s543 = ssub.s32 %s21, 2
        // Predicated region
        $region69: #{tpu_custom_call.1} parent=67 // pred_check
          %p544 = pneg %p170
        $region70: #{tpu_custom_call.1} parent=67 // pred_check_branch
          %546 = sbr.rel (%p544) target = $region72
        $region71: #{tpu_custom_call.1} parent=67 // pred_region
          %s547 = sand.u32 %s155, 1
          %s548 = scalar_lea.sflag [#allocation4], %s547
          %s549 = sand.u32 %s155, 1
          %s550 = smul.addr %s549, 8
          %s551 = scalar_lea.vmem [#allocation11], %s550
          %553 = dma.done %s548, 128
        $region72: #{tpu_custom_call.1} parent=67 // pred_fallthru
          _
      $region68: #{tpu_custom_call.1} parent=5 // pred_fallthru
        _
    $region6: #{tpu_custom_call.1} parent=1 // loop_footer
      %s25 = sadd.s32 1, %s21
    $region7: #{tpu_custom_call.1} parent=1 // loop_footer_branch
      %20 = sbr.rel target = $region3
    $region8: #{tpu_custom_call.1} parent=1 // loop_exit
      _
    %554 = vsyncpa [#allocation3], 1
    %s555 = scalar_lea.sflag [#allocation3], 1
    %556 = vsyncpa %s555, 1
    %557 = vsyncpa [#allocation6], 1
    %s558 = scalar_lea.sflag [#allocation6], 1
    %559 = vsyncpa %s558, 1
    %560 = vsyncpa [#allocation9], 1
    %561 = vsyncpa [#allocation4], 1
    %s562 = scalar_lea.sflag [#allocation4], 1
    %563 = vsyncpa %s562, 1

// kernel: tpu_custom_call.1
$region0: #{tpu_custom_call.1}
  #allocation0 [shape = 'u32[]', space=smem, size = 0x4, offset = 0x4, fixed_abs, tag = 'smem constant byte address 0x4 - core index']
  #allocation1 [shape = 'u32[72,128]{1,0:T(1,128)}', space=vmem, size = 0x9000, scoped, tag = 'internal scratch']
  %s0 = inlined_call_operand.hbm [shape: f32[16,128], index: 0, kind: input, shape index: {}]
  %s1 = inlined_call_operand.hbm [shape: f32[16,128], index: 1, kind: input, shape index: {}]
  %s2 = inlined_call_operand.hbm [shape: f32[16,128], index: 2, kind: input, shape index: {}]
  %s3 = inlined_call_operand.hbm [shape: f32[3,128,128], index: 3, kind: input, shape index: {}]
  %s4 = inlined_call_operand.hbm [shape: f32[3,128], index: 4, kind: input, shape index: {}]
  %s5 = inlined_call_operand.hbm [shape: f32[16,128], index: 5, kind: output, shape index: {}]
  %s6 = sld [smem:[#allocation0]]
  $region73: #{tpu_custom_call.1} parent=0
    _
  %s8 = ssub.s32 1, %s6
  %s9 = scalar_select 0, %s8, %s6
  $region1: #{tpu_custom_call.1} parent=0
    #allocation2 [shape = 'u8[8192]{0}', space=vmem, size = 0x2000, scoped, tag = 'input window, operand 0']
    #allocation3 [shape = 's32[2]{0}', space=sflag, size = 0x8, scoped, tag = 'scoped memory for tpu_custom_call.1']
    #allocation4 [shape = 's32[2]{0}', space=sflag, size = 0x8, scoped, tag = 'scoped memory for tpu_custom_call.1']
    #allocation5 [shape = 'u8[8192]{0}', space=vmem, size = 0x2000, scoped, tag = 'input window, operand 1']
    #allocation6 [shape = 's32[2]{0}', space=sflag, size = 0x8, scoped, tag = 'scoped memory for tpu_custom_call.1']
    #allocation7 [shape = 'u8[8192]{0}', space=vmem, size = 0x2000, scoped, tag = 'input window, operand 2']
    #allocation8 [shape = 'u8[196608]{0}', space=vmem, size = 0x30000, scoped, tag = 'input window, operand 3, single buffered']
    #allocation9 [shape = 's32[1]{0}', space=sflag, size = 0x4, scoped, tag = 'scoped memory for tpu_custom_call.1']
    #allocation10 [shape = 'u8[2048]{0}', space=vmem, size = 0x800, scoped, tag = 'input window, operand 4, single buffered']
    #allocation11 [shape = 'u8[8192]{0}', space=vmem, size = 0x2000, scoped, tag = 'output window, operand 0']
    %10 = vsyncpa [#allocation3], 0
    %s11 = scalar_lea.sflag [#allocation3], 1
    %12 = vsyncpa %s11, 0
    %13 = vsyncpa [#allocation6], 0
    %s14 = scalar_lea.sflag [#allocation6], 1
    %15 = vsyncpa %s14, 0
    %16 = vsyncpa [#allocation9], 0
    %17 = vsyncpa [#allocation4], 0
    %s18 = scalar_lea.sflag [#allocation4], 1
    %19 = vsyncpa %s18, 0
    loop: start=0, step=1, limit=4
    $region2: #{tpu_custom_call.1} parent=1 // loop_pre_header
      _
    $region3: #{tpu_custom_call.1} parent=1 // loop_header
      %s21 = sphi 0, %s25
      %p22 = scmp.ge.s32.totalorder %s21, 4
      %s31 = sphi 0, %s33
      %s34 = sphi 0, %s31
      %s35 = sphi 0, %s34
      %s51 = sphi 0, %s35
      %s57 = sphi 0, %s59
      %s60 = sphi 0, %s57
      %s61 = sphi 0, %s60
      %s77 = sphi 0, %s61
      %s83 = sphi 0, %s85
      %s86 = sphi 0, %s83
      %s87 = sphi 0, %s86
      %s103 = sphi 0, %s87
      %s107 = sphi 0, %s107
      %s109 = sphi 0, %s107
      %s110 = sphi 0, %s109
      %s124 = sphi 0, %s110
      %s128 = sphi 0, %s128
      %s130 = sphi 0, %s128
      %s131 = sphi 0, %s130
      %s145 = sphi 0, %s131
      %s151 = sphi 0, %s153
      %s154 = sphi 0, %s151
      %s155 = sphi 0, %s154
      %s171 = sphi 0, %s155
    $region4: #{tpu_custom_call.1} parent=1 // loop_header_branch
      %24 = sbr.rel (%p22) target = $region8
    $region5: #{tpu_custom_call.1} parent=1 // loop_body
      %s26 = ssub.s32 %s21, 1
      %s27 = ssub.s32 %s21, 2
      %s28 = sadd.s32 %s21, 1
      %s29 = ssub.s32 %s21, %s28
      %p30 = scmp.eq.s32.totalorder %s29, 0
      %s32 = sadd.s32 %s31, 1
      %s33 = scalar_select %p30, %s31, %s32
      %p36 = pneg %p30
      %p37 = scmp.eq.s32.totalorder %s21, 1
      %p38 = por %p36, %p37
      %p39 = scmp.ne.s32.totalorder %s31, %s34
      %p40 = scmp.eq.s32.totalorder %s21, 0
      %p41 = por %p39, %p40
      %p42 = scmp.ne.s32.totalorder %s31, %s34
      %p43 = scmp.eq.s32.totalorder %s26, 1
      %p44 = por %p42, %p43
      %p45 = scmp.ne.s32.totalorder %s34, %s35
      %p46 = scmp.eq.s32.totalorder %s26, 0
      %p47 = por %p45, %p46
      %p48 = scmp.ne.s32.totalorder %s34, %s35
      %p49 = scmp.eq.s32.totalorder %s27, 1
      %p50 = por %p48, %p49
      %p52 = scmp.ne.s32.totalorder %s35, %s51
      %p53 = scmp.eq.s32.totalorder %s27, 0
      %p54 = por %p52, %p53
      %s55 = ssub.s32 %s21, %s28
      %p56 = scmp.eq.s32.totalorder %s55, 0
      %s58 = sadd.s32 %s57, 1
      %s59 = scalar_select %p56, %s57, %s58
      %p62 = pneg %p56
      %p63 = scmp.eq.s32.totalorder %s21, 1
      %p64 = por %p62, %p63
      %p65 = scmp.ne.s32.totalorder %s57, %s60
      %p66 = scmp.eq.s32.totalorder %s21, 0
      %p67 = por %p65, %p66
      %p68 = scmp.ne.s32.totalorder %s57, %s60
      %p69 = scmp.eq.s32.totalorder %s26, 1
      %p70 = por %p68, %p69
      %p71 = scmp.ne.s32.totalorder %s60, %s61
      %p72 = scmp.eq.s32.totalorder %s26, 0
      %p73 = por %p71, %p72
      %p74 = scmp.ne.s32.totalorder %s60, %s61
      %p75 = scmp.eq.s32.totalorder %s27, 1
      %p76 = por %p74, %p75
      %p78 = scmp.ne.s32.totalorder %s61, %s77
      %p79 = scmp.eq.s32.totalorder %s27, 0
      %p80 = por %p78, %p79
      %s81 = ssub.s32 %s21, %s28
      %p82 = scmp.eq.s32.totalorder %s81, 0
      %s84 = sadd.s32 %s83, 1
      %s85 = scalar_select %p82, %s83, %s84
      %p88 = pneg %p82
      %p89 = scmp.eq.s32.totalorder %s21, 1
      %p90 = por %p88, %p89
      %p91 = scmp.ne.s32.totalorder %s83, %s86
      %p92 = scmp.eq.s32.totalorder %s21, 0
      %p93 = por %p91, %p92
      %p94 = scmp.ne.s32.totalorder %s83, %s86
      %p95 = scmp.eq.s32.totalorder %s26, 1
      %p96 = por %p94, %p95
      %p97 = scmp.ne.s32.totalorder %s86, %s87
      %p98 = scmp.eq.s32.totalorder %s26, 0
      %p99 = por %p97, %p98
      %p100 = scmp.ne.s32.totalorder %s86, %s87
      %p101 = scmp.eq.s32.totalorder %s27, 1
      %p102 = por %p100, %p101
      %p104 = scmp.ne.s32.totalorder %s87, %s103
      %p105 = scmp.eq.s32.totalorder %s27, 0
      %p106 = por %p104, %p105
      %s108 = sadd.s32 %s107, 1
      %p111 = scmp.eq.s32.totalorder %s21, 1
      %p112 = scmp.ne.s32.totalorder %s107, %s109
      %p113 = scmp.eq.s32.totalorder %s21, 0
      %p114 = por %p112, %p113
      %p115 = scmp.ne.s32.totalorder %s107, %s109
      %p116 = scmp.eq.s32.totalorder %s26, 1
      %p117 = por %p115, %p116
      %p118 = scmp.ne.s32.totalorder %s109, %s110
      %p119 = scmp.eq.s32.totalorder %s26, 0
      %p120 = por %p118, %p119
      %p121 = scmp.ne.s32.totalorder %s109, %s110
      %p122 = scmp.eq.s32.totalorder %s27, 1
      %p123 = por %p121, %p122
      %p125 = scmp.ne.s32.totalorder %s110, %s124
      %p126 = scmp.eq.s32.totalorder %s27, 0
      %p127 = por %p125, %p126
      %s129 = sadd.s32 %s128, 1
      %p132 = scmp.eq.s32.totalorder %s21, 1
      %p133 = scmp.ne.s32.totalorder %s128, %s130
      %p134 = scmp.eq.s32.totalorder %s21, 0
      %p135 = por %p133, %p134
      %p136 = scmp.ne.s32.totalorder %s128, %s130
      %p137 = scmp.eq.s32.totalorder %s26, 1
      %p138 = por %p136, %p137
      %p139 = scmp.ne.s32.totalorder %s130, %s131
      %p140 = scmp.eq.s32.totalorder %s26, 0
      %p141 = por %p139, %p140
      %p142 = scmp.ne.s32.totalorder %s130, %s131
      %p143 = scmp.eq.s32.totalorder %s27, 1
      %p144 = por %p142, %p143
      %p146 = scmp.ne.s32.totalorder %s131, %s145
      %p147 = scmp.eq.s32.totalorder %s27, 0
      %p148 = por %p146, %p147
      %s149 = ssub.s32 %s21, %s28
      %p150 = scmp.eq.s32.totalorder %s149, 0
      %s152 = sadd.s32 %s151, 1
      %s153 = scalar_select %p150, %s151, %s152
      %p156 = pneg %p150
      %p157 = scmp.eq.s32.totalorder %s21, 1
      %p158 = por %p156, %p157
      %p159 = scmp.ne.s32.totalorder %s151, %s154
      %p160 = scmp.eq.s32.totalorder %s21, 0
      %p161 = por %p159, %p160
      %p162 = scmp.ne.s32.totalorder %s151, %s154
      %p163 = scmp.eq.s32.totalorder %s26, 1
      %p164 = por %p162, %p163
      %p165 = scmp.ne.s32.totalorder %s154, %s155
      %p166 = scmp.eq.s32.totalorder %s26, 0
      %p167 = por %p165, %p166
      %p168 = scmp.ne.s32.totalorder %s154, %s155
      %p169 = scmp.eq.s32.totalorder %s27, 1
      %p170 = por %p168, %p169
      %p172 = scmp.ne.s32.totalorder %s155, %s171
      %p173 = scmp.eq.s32.totalorder %s27, 0
      %p174 = por %p172, %p173
      %p175 = scmp.le.s32.totalorder 1, %s21
      %p176 = scmp.lt.s32.totalorder %s21, 3
      %p177 = pnand %p175, %p176
      %p178 = pneg %p177
      // Predicated region
      $region9: #{tpu_custom_call.1} parent=5 // pred_check
        _
      $region10: #{tpu_custom_call.1} parent=5 // pred_check_branch
        %180 = sbr.rel (%p177) target = $region12
      $region11: #{tpu_custom_call.1} parent=5 // pred_region
        %s181 = ssub.s32 %s21, 1
        // Predicated region
        $region13: #{tpu_custom_call.1} parent=11 // pred_check
          %p182 = pneg %p120
        $region14: #{tpu_custom_call.1} parent=11 // pred_check_branch
          %184 = sbr.rel (%p182) target = $region16
        $region15: #{tpu_custom_call.1} parent=11 // pred_region
          %186 = vsyncadd [#allocation9], 0
          %s187 = sshll.u32 %s3, 4
          %s188 = int_to_ptr.hbm [resolvable:$true] %s187
          %s189 = sshll.u32 [#allocation8], 4
          %s190 = int_to_ptr.vmem [resolvable:$true] %s189
          %195 = dma.hbm_to_vmem [thread:$0]  %s188, 6144, %s190, [#allocation9], 128, 128, 8
        $region16: #{tpu_custom_call.1} parent=11 // pred_fallthru
          _
        // Predicated region
        $region17: #{tpu_custom_call.1} parent=11 // pred_check
          %p196 = pneg %p141
        $region18: #{tpu_custom_call.1} parent=11 // pred_check_branch
          %198 = sbr.rel (%p196) target = $region20
        $region19: #{tpu_custom_call.1} parent=11 // pred_region
          %200 = vsyncadd [#allocation9], 0
          %s202 = sshll.u32 %s4, 4
          %s203 = int_to_ptr.hbm [resolvable:$true] %s202
          %s204 = sshll.u32 [#allocation10], 4
          %s205 = int_to_ptr.vmem [resolvable:$true] %s204
          %207 = dma.hbm_to_vmem [thread:$0]  %s203, 64, %s205, [#allocation9]
        $region20: #{tpu_custom_call.1} parent=11 // pred_fallthru
          _
      $region12: #{tpu_custom_call.1} parent=5 // pred_fallthru
        _
      %p208 = scmp.lt.s32.totalorder %s21, 2
      // Predicated region
      $region21: #{tpu_custom_call.1} parent=5 // pred_check
        %p209 = pneg %p208
      $region22: #{tpu_custom_call.1} parent=5 // pred_check_branch
        %211 = sbr.rel (%p209) target = $region24
      $region23: #{tpu_custom_call.1} parent=5 // pred_region
        // Predicated region
        $region25: #{tpu_custom_call.1} parent=23 // pred_check
          %p212 = pneg %p41
        $region26: #{tpu_custom_call.1} parent=23 // pred_check_branch
          %214 = sbr.rel (%p212) target = $region28
        $region27: #{tpu_custom_call.1} parent=23 // pred_region
          %s215 = sand.u32 %s31, 1
          %s216 = scalar_lea.sflag [#allocation3], %s215
          %s217 = sand.u32 %s31, 1
          %s218 = smul.addr %s217, 8
          %s219 = scalar_lea.vmem [#allocation2], %s218
          %221 = vsyncadd %s216, 0
          %s222 = smul.addr %s21, 8
          %s223 = scalar_lea.hbm %s0, %s222
          %s225 = sshll.u32 %s223, 4
          %s226 = int_to_ptr.hbm [resolvable:$true] %s225
          %s227 = sshll.u32 %s219, 4
          %s228 = int_to_ptr.vmem [resolvable:$true] %s227
          %230 = dma.hbm_to_vmem [thread:$0]  %s226, 128, %s228, %s216
        $region28: #{tpu_custom_call.1} parent=23 // pred_fallthru
          _
        // Predicated region
        $region29: #{tpu_custom_call.1} parent=23 // pred_check
          %p231 = pneg %p67
        $region30: #{tpu_custom_call.1} parent=23 // pred_check_branch
          %233 = sbr.rel (%p231) target = $region32
        $region31: #{tpu_custom_call.1} parent=23 // pred_region
          %s234 = sand.u32 %s21, 1
          %s235 = scalar_lea.sflag [#allocation6], %s234
          %s236 = sand.u32 %s57, 1
          %s237 = smul.addr %s236, 8
          %s238 = scalar_lea.vmem [#allocation5], %s237
          %240 = vsyncadd %s235, 0
          %s241 = smul.addr %s21, 8
          %s242 = scalar_lea.hbm %s1, %s241
          %s244 = sshll.u32 %s242, 4
          %s245 = int_to_ptr.hbm [resolvable:$true] %s244
          %s246 = sshll.u32 %s238, 4
          %s247 = int_to_ptr.vmem [resolvable:$true] %s246
          %249 = dma.hbm_to_vmem [thread:$0]  %s245, 128, %s247, %s235
        $region32: #{tpu_custom_call.1} parent=23 // pred_fallthru
          _
        // Predicated region
        $region33: #{tpu_custom_call.1} parent=23 // pred_check
          %p250 = pneg %p93
        $region34: #{tpu_custom_call.1} parent=23 // pred_check_branch
          %252 = sbr.rel (%p250) target = $region36
        $region35: #{tpu_custom_call.1} parent=23 // pred_region
          %s253 = sand.u32 %s21, 1
          %s254 = scalar_lea.sflag [#allocation6], %s253
          %s255 = sand.u32 %s83, 1
          %s256 = smul.addr %s255, 8
          %s257 = scalar_lea.vmem [#allocation7], %s256
          %259 = vsyncadd %s254, 0
          %s260 = smul.addr %s21, 8
          %s261 = scalar_lea.hbm %s2, %s260
          %s263 = sshll.u32 %s261, 4
          %s264 = int_to_ptr.hbm [resolvable:$true] %s263
          %s265 = sshll.u32 %s257, 4
          %s266 = int_to_ptr.vmem [resolvable:$true] %s265
          %268 = dma.hbm_to_vmem [thread:$0]  %s264, 128, %s266, %s254
        $region36: #{tpu_custom_call.1} parent=23 // pred_fallthru
          _
      $region24: #{tpu_custom_call.1} parent=5 // pred_fallthru
        _
      %p269 = scmp.le.s32.totalorder 1, %s21
      %p270 = scmp.lt.s32.totalorder %s21, 3
      %p271 = pnand %p269, %p270
      %p272 = pneg %p271
      // Predicated region
      $region37: #{tpu_custom_call.1} parent=5 // pred_check
        _
      $region38: #{tpu_custom_call.1} parent=5 // pred_check_branch
        %274 = sbr.rel (%p271) target = $region40
      $region39: #{tpu_custom_call.1} parent=5 // pred_region
        %s275 = ssub.s32 %s21, 1
        %s276 = sand.u32 %s34, 1
        %s277 = scalar_lea.sflag [#allocation3], %s276
        %s278 = sand.u32 %s34, 1
        %s279 = smul.addr %s278, 8
        %s280 = scalar_lea.vmem [#allocation2], %s279
        // Predicated region
        $region41: #{tpu_custom_call.1} parent=39 // pred_check
          %p281 = pneg %p47
        $region42: #{tpu_custom_call.1} parent=39 // pred_check_branch
          %283 = sbr.rel (%p281) target = $region44
        $region43: #{tpu_custom_call.1} parent=39 // pred_region
          %285 = dma.done %s277, 128
        $region44: #{tpu_custom_call.1} parent=39 // pred_fallthru
          _
        %s286 = sand.u32 %s26, 1
        %s287 = scalar_lea.sflag [#allocation6], %s286
        %s288 = sand.u32 %s60, 1
        %s289 = smul.addr %s288, 8
        %s290 = scalar_lea.vmem [#allocation5], %s289
        // Predicated region
        $region45: #{tpu_custom_call.1} parent=39 // pred_check
          %p291 = pneg %p73
        $region46: #{tpu_custom_call.1} parent=39 // pred_check_branch
          %293 = sbr.rel (%p291) target = $region48
        $region47: #{tpu_custom_call.1} parent=39 // pred_region
          %295 = dma.done %s287, 128
        $region48: #{tpu_custom_call.1} parent=39 // pred_fallthru
          _
        %s296 = sand.u32 %s26, 1
        %s297 = scalar_lea.sflag [#allocation6], %s296
        %s298 = sand.u32 %s86, 1
        %s299 = smul.addr %s298, 8
        %s300 = scalar_lea.vmem [#allocation7], %s299
        // Predicated region
        $region49: #{tpu_custom_call.1} parent=39 // pred_check
          %p301 = pneg %p99
        $region50: #{tpu_custom_call.1} parent=39 // pred_check_branch
          %303 = sbr.rel (%p301) target = $region52
        $region51: #{tpu_custom_call.1} parent=39 // pred_region
          %305 = dma.done %s297, 128
        $region52: #{tpu_custom_call.1} parent=39 // pred_fallthru
          _
        // Predicated region
        $region53: #{tpu_custom_call.1} parent=39 // pred_check
          %p306 = pneg %p120
        $region54: #{tpu_custom_call.1} parent=39 // pred_check_branch
          %308 = sbr.rel (%p306) target = $region56
        $region55: #{tpu_custom_call.1} parent=39 // pred_region
          %310 = dma.done [#allocation9], 6144
        $region56: #{tpu_custom_call.1} parent=39 // pred_fallthru
          _
        // Predicated region
        $region57: #{tpu_custom_call.1} parent=39 // pred_check
          %p311 = pneg %p141
        $region58: #{tpu_custom_call.1} parent=39 // pred_check_branch
          %313 = sbr.rel (%p311) target = $region60
        $region59: #{tpu_custom_call.1} parent=39 // pred_region
          %315 = dma.done [#allocation9], 64
        $region60: #{tpu_custom_call.1} parent=39 // pred_fallthru
          _
        %s316 = sand.u32 %s34, 1
        %s317 = scalar_lea.sflag [#allocation3], %s316
        %s318 = sand.u32 %s34, 1
        %s319 = smul.addr %s318, 8
        %s320 = scalar_lea.vmem [#allocation2], %s319
        %p321 = pneg %p47
        %p322 = pneg %p44
        %s323 = sand.u32 %s26, 1
        %s324 = scalar_lea.sflag [#allocation6], %s323
        %s325 = sand.u32 %s60, 1
        %s326 = smul.addr %s325, 8
        %s327 = scalar_lea.vmem [#allocation5], %s326
        %p328 = pneg %p73
        %p329 = pneg %p70
        %s330 = sand.u32 %s26, 1
        %s331 = scalar_lea.sflag [#allocation6], %s330
        %s332 = sand.u32 %s86, 1
        %s333 = smul.addr %s332, 8
        %s334 = scalar_lea.vmem [#allocation7], %s333
        %p335 = pneg %p99
        %p336 = pneg %p96
        %p337 = pneg %p120
        %p338 = pneg %p117
        %p339 = pneg %p141
        %p340 = pneg %p138
        %p341 = pneg %p167
        %p342 = pneg %p164
        %s343 = sand.u32 %s154, 1
        %s344 = scalar_lea.sflag [#allocation4], %s343
        %s345 = sand.u32 %s154, 1
        %s346 = smul.addr %s345, 8
        %s347 = scalar_lea.vmem [#allocation11], %s346
        %v348 = vld [vmem:[%s280] sm:$0xff]
        %v349 = vld [vmem:[%s290] sm:$0xff]
        %v350 = vld [vmem:[%s300] sm:$0xff]
        %v351 = vadd.f32 %v348, %v349
        %v352 = vadd.f32 %v351, %v350
        %v353 = vld [vmem:[#allocation10] sm:$0x7]
        %v354 = vld [vmem:[#allocation8] sm:$0xff]
        %v355 = vld [vmem:[#allocation8 + $0x8] sm:$0xff]
        %v356 = vld [vmem:[#allocation8 + $0x10] sm:$0xff]
        %v357 = vld [vmem:[#allocation8 + $0x18] sm:$0xff]
        %v358 = vld [vmem:[#allocation8 + $0x20] sm:$0xff]
        %v359 = vld [vmem:[#allocation8 + $0x28] sm:$0xff]
        %v360 = vld [vmem:[#allocation8 + $0x30] sm:$0xff]
        %v361 = vld [vmem:[#allocation8 + $0x38] sm:$0xff]
        %v362 = vld [vmem:[#allocation8 + $0x40] sm:$0xff]
        %v363 = vld [vmem:[#allocation8 + $0x48] sm:$0xff]
        %v364 = vld [vmem:[#allocation8 + $0x50] sm:$0xff]
        %v365 = vld [vmem:[#allocation8 + $0x58] sm:$0xff]
        %v366 = vld [vmem:[#allocation8 + $0x60] sm:$0xff]
        %v367 = vld [vmem:[#allocation8 + $0x68] sm:$0xff]
        %v368 = vld [vmem:[#allocation8 + $0x70] sm:$0xff]
        %v369 = vld [vmem:[#allocation8 + $0x78] sm:$0xff]
        %s370 = scalar_lea.vmem [#allocation8], 128
        %v371 = vld [vmem:[%s370] sm:$0xff]
        %v372 = vld [vmem:[%s370 + $0x8] sm:$0xff]
        %v373 = vld [vmem:[%s370 + $0x10] sm:$0xff]
        %v374 = vld [vmem:[%s370 + $0x18] sm:$0xff]
        %v375 = vld [vmem:[%s370 + $0x20] sm:$0xff]
        %v376 = vld [vmem:[%s370 + $0x28] sm:$0xff]
        %v377 = vld [vmem:[%s370 + $0x30] sm:$0xff]
        %v378 = vld [vmem:[%s370 + $0x38] sm:$0xff]
        %v379 = vld [vmem:[%s370 + $0x40] sm:$0xff]
        %v380 = vld [vmem:[%s370 + $0x48] sm:$0xff]
        %v381 = vld [vmem:[%s370 + $0x50] sm:$0xff]
        %v382 = vld [vmem:[%s370 + $0x58] sm:$0xff]
        %v383 = vld [vmem:[%s370 + $0x60] sm:$0xff]
        %v384 = vld [vmem:[%s370 + $0x68] sm:$0xff]
        %v385 = vld [vmem:[%s370 + $0x70] sm:$0xff]
        %v386 = vld [vmem:[%s370 + $0x78] sm:$0xff]
        %387 = vmatpush.msra.mxu0 %v386
        %388 = vmatpush.msra.mxu0 %v385
        %389 = vmatpush.msra.mxu0 %v384
        %390 = vmatpush.msra.mxu0 %v383
        %391 = vmatpush.msra.mxu0 %v382
        %392 = vmatpush.msra.mxu0 %v381
        %393 = vmatpush.msra.mxu0 %v380
        %394 = vmatpush.msra.mxu0 %v379
        %395 = vmatpush.msra.mxu0 %v378
        %396 = vmatpush.msra.mxu0 %v377
        %397 = vmatpush.msra.mxu0 %v376
        %398 = vmatpush.msra.mxu0 %v375
        %399 = vmatpush.msra.mxu0 %v374
        %400 = vmatpush.msra.mxu0 %v373
        %401 = vmatpush.msra.mxu0 %v372
        %402 = vmatpush.msra.mxu0 %v371
        %403 = vmatmul.f32.gmra.mxu0 %v349
        %v404 = vpop.f32.mrf.mxu0
        %v405 = vadd.f32 0.0, %v404
        %406 = vdwg.mxu0
        %407 = vmatpush.msra.mxu0 %v369
        %408 = vmatpush.msra.mxu0 %v368
        %409 = vmatpush.msra.mxu0 %v367
        %410 = vmatpush.msra.mxu0 %v366
        %411 = vmatpush.msra.mxu0 %v365
        %412 = vmatpush.msra.mxu0 %v364
        %413 = vmatpush.msra.mxu0 %v363
        %414 = vmatpush.msra.mxu0 %v362
        %415 = vmatpush.msra.mxu0 %v361
        %416 = vmatpush.msra.mxu0 %v360
        %417 = vmatpush.msra.mxu0 %v359
        %418 = vmatpush.msra.mxu0 %v358
        %419 = vmatpush.msra.mxu0 %v357
        %420 = vmatpush.msra.mxu0 %v356
        %421 = vmatpush.msra.mxu0 %v355
        %422 = vmatpush.msra.mxu0 %v354
        %423 = vmatmul.f32.gmra.mxu0 %v348
        %v424 = vpop.f32.mrf.mxu0
        %v425 = vadd.f32 %v405, %v424
        %426 = vdwg.mxu0
        %s427 = scalar_lea.vmem [#allocation8], 256
        %v428 = vld [vmem:[%s427] sm:$0xff]
        %v429 = vld [vmem:[%s427 + $0x8] sm:$0xff]
        %v430 = vld [vmem:[%s427 + $0x10] sm:$0xff]
        %v431 = vld [vmem:[%s427 + $0x18] sm:$0xff]
        %v432 = vld [vmem:[%s427 + $0x20] sm:$0xff]
        %v433 = vld [vmem:[%s427 + $0x28] sm:$0xff]
        %v434 = vld [vmem:[%s427 + $0x30] sm:$0xff]
        %v435 = vld [vmem:[%s427 + $0x38] sm:$0xff]
        %v436 = vld [vmem:[%s427 + $0x40] sm:$0xff]
        %v437 = vld [vmem:[%s427 + $0x48] sm:$0xff]
        %v438 = vld [vmem:[%s427 + $0x50] sm:$0xff]
        %v439 = vld [vmem:[%s427 + $0x58] sm:$0xff]
        %v440 = vld [vmem:[%s427 + $0x60] sm:$0xff]
        %v441 = vld [vmem:[%s427 + $0x68] sm:$0xff]
        %v442 = vld [vmem:[%s427 + $0x70] sm:$0xff]
        %v443 = vld [vmem:[%s427 + $0x78] sm:$0xff]
        %444 = vmatpush.msra.mxu0 %v443
        %445 = vmatpush.msra.mxu0 %v442
        %446 = vmatpush.msra.mxu0 %v441
        %447 = vmatpush.msra.mxu0 %v440
        %448 = vmatpush.msra.mxu0 %v439
        %449 = vmatpush.msra.mxu0 %v438
        %450 = vmatpush.msra.mxu0 %v437
        %451 = vmatpush.msra.mxu0 %v436
        %452 = vmatpush.msra.mxu0 %v435
        %453 = vmatpush.msra.mxu0 %v434
        %454 = vmatpush.msra.mxu0 %v433
        %455 = vmatpush.msra.mxu0 %v432
        %456 = vmatpush.msra.mxu0 %v431
        %457 = vmatpush.msra.mxu0 %v430
        %458 = vmatpush.msra.mxu0 %v429
        %459 = vmatpush.msra.mxu0 %v428
        %460 = vmatmul.f32.gmra.mxu0 %v350
        %v461 = vpop.f32.mrf.mxu0
        %v462 = vadd.f32 0.0, %v461
        %463 = vdwg.mxu0
        %v464 = vadd.f32 %v425, %v462
        %v465 = vperm.slane %v353, 0
        %v466 = vadd.f32 %v464, %v465
        %467 = vadd.xlane.f32.xlu0 %v466
        %v468 = vpop.xlane.xlu0 %467
        %v469 = vrcp.pop 128.0
        %v470 = vmul.f32 128.0, %v469
        %v471 = vsub.f32 1.0, %v470
        %v472 = vmul.f32 %v469, %v471
        %v473 = vadd.f32 %v469, %v472
        %vm474 = vweird.f32 %v469
        %v475 = vsel %vm474, %v469, %v473
        %v476 = vmul.f32 %v468, %v475
        %v477 = vsub.f32 %v466, %v476
        %v478 = vmul.f32 %v477, %v477
        %479 = vadd.xlane.f32.xlu0 %v478
        %v480 = vpop.xlane.xlu0 %479
        %v481 = vmul.f32 %v480, %v475
        %v482 = vadd.f32 %v481, 1e-05
        %v483 = vrsqrt.pop %v482
        %v484 = vmul.f32 %v483, %v482
        %v485 = vmul.f32 %v484, %v483
        %v486 = vmul.f32 0.5, %v485
        %v487 = vsub.f32 1.5, %v486
        %v488 = vmul.f32 %v483, %v487
        %vm489 = vweird.f32 %v482
        %vm490 = vweird.f32 %v483
        %vm491 = vmor %vm489, %vm490
        %v492 = vsel %vm491, %v483, %v488
        %v493 = vmul.f32 %v477, %v492
        %v494 = vperm.slane %v353, 1
        %v495 = vmul.f32 %v493, %v494
        %v496 = vperm.slane %v353, 2
        %v497 = vadd.f32 %v495, %v496
        %v498 = vxor.u32 %v497, 2147483648
        %v499 = vmul.f32 %v498, 1.442695
        %v500 = vpow.pop %v499
        %v501 = vadd.f32 %v500, 1.0
        %v502 = vrcp.pop %v501
        %v503 = vmul.f32 %v501, %v502
        %v504 = vsub.f32 1.0, %v503
        %v505 = vmul.f32 %v502, %v504
        %v506 = vadd.f32 %v502, %v505
        %vm507 = vweird.f32 %v501
        %vm508 = vweird.f32 %v502
        %vm509 = vmor %vm507, %vm508
        %v510 = vsel %vm509, %v502, %v506
        %v511 = vand.u32 2147483647, %v501
        %vm512 = vcmp.eq.f32.partialorder %v511, 8.507059e+37
        %v513 = vand.u32 %v501, 2147483648
        %v514 = vor.u32 1.1754944e-38, %v513
        %v515 = vsel %vm512, %v514, %v510
        %v516 = vmul.f32 1.0, %v515
        %v517 = vadd.f32 %v516, 0.33333334
        %v518 = vmul.f32 %v517, %v352
        %519 = vst [vmem:[%s347] sm:$0xff] %v518
        %s520 = sand.u32 %s154, 1
        %s521 = scalar_lea.sflag [#allocation4], %s520
        %s522 = sand.u32 %s154, 1
        %s523 = smul.addr %s522, 8
        %s524 = scalar_lea.vmem [#allocation11], %s523
        // Predicated region
        $region61: #{tpu_custom_call.1} parent=39 // pred_check
          %p525 = pneg %p164
        $region62: #{tpu_custom_call.1} parent=39 // pred_check_branch
          %527 = sbr.rel (%p525) target = $region64
        $region63: #{tpu_custom_call.1} parent=39 // pred_region
          %529 = vsyncadd %s521, 0
          %s530 = smul.addr %s26, 8
          %s531 = scalar_lea.hbm %s5, %s530
          %s533 = sshll.u32 %s524, 4
          %s534 = int_to_ptr.vmem [resolvable:$true] %s533
          %s535 = sshll.u32 %s531, 4
          %s536 = int_to_ptr.hbm [resolvable:$true] %s535
          %538 = dma.vmem_to_hbm [thread:$0]  %s534, 128, %s536, %s521
        $region64: #{tpu_custom_call.1} parent=39 // pred_fallthru
          _
      $region40: #{tpu_custom_call.1} parent=5 // pred_fallthru
        _
      %p539 = scmp.le.s32.totalorder 2, %s21
      // Predicated region
      $region65: #{tpu_custom_call.1} parent=5 // pred_check
        %p540 = pneg %p539
      $region66: #{tpu_custom_call.1} parent=5 // pred_check_branch
        %542 = sbr.rel (%p540) target = $region68
      $region67: #{tpu_custom_call.1} parent=5 // pred_region
        %s543 = ssub.s32 %s21, 2
        // Predicated region
        $region69: #{tpu_custom_call.1} parent=67 // pred_check
          %p544 = pneg %p170
        $region70: #{tpu_custom_call.1} parent=67 // pred_check_branch
          %546 = sbr.rel (%p544) target = $region72
        $region71: #{tpu_custom_call.1} parent=67 // pred_region
          %s547 = sand.u32 %s155, 1
          %s548 = scalar_lea.sflag [#allocation4], %s547
          %s549 = sand.u32 %s155, 1
          %s550 = smul.addr %s549, 8
          %s551 = scalar_lea.vmem [#allocation11], %s550
          %553 = dma.done %s548, 128
        $region72: #{tpu_custom_call.1} parent=67 // pred_fallthru
          _
      $region68: #{tpu_custom_call.1} parent=5 // pred_fallthru
        _
    $region6: #{tpu_custom_call.1} parent=1 // loop_footer
      %s25 = sadd.s32 1, %s21
    $region7: #{tpu_custom_call.1} parent=1 // loop_footer_branch
      %20 = sbr.rel target = $region3
    $region8: #{tpu_custom_call.1} parent=1 // loop_exit
      _
    %554 = vsyncpa [#allocation3], 1
    %s555 = scalar_lea.sflag [#allocation3], 1
    %556 = vsyncpa %s555, 1
    %557 = vsyncpa [#allocation6], 1
    %s558 = scalar_lea.sflag [#allocation6], 1
    %559 = vsyncpa %s558, 1
    %560 = vsyncpa [#allocation9], 1
    %561 = vsyncpa [#allocation4], 1
    %s562 = scalar_lea.sflag [#allocation4], 1
    %563 = vsyncpa %s562, 1

</llo_original>
